<compile_context>
chip_gen: v6e
topology: v6e:2x2x1
jax: 0.10.0
libtpu: 0.0.40
codegen_flags: <defaults>
</compile_context>

<pallas_src>
import jax
import jax.numpy as jnp
from jax.experimental import pallas as pl
from jax.experimental.pallas import tpu as pltpu


# ---------------------------------------------------------------------------
# Kernel: fused conv-as-matmul + GDN on one row-block of im2col patches.
# ---------------------------------------------------------------------------
def _conv_gdn_kernel(patches_ref, w_ref, gt_ref, beta_ref, out_ref):
    # Convolution expressed as a single MXU matmul (bf16 operands, f32 accumulate).
    y = jnp.dot(patches_ref[...], w_ref[...], preferred_element_type=jnp.float32)
    # GDN denominator: beta + y^2 @ gamma^T (second MXU matmul, bf16 operands).
    y2 = (y * y).astype(gt_ref.dtype)
    norm = jnp.dot(y2, gt_ref[...], preferred_element_type=jnp.float32) + beta_ref[...]
    # Guard against non-positive denominators (padded lanes / pathological params).
    norm = jnp.maximum(norm, 1e-6)
    # out = y / sqrt(norm), elementwise in f32 (rsqrt runs on the EUP).
    out_ref[...] = (y * jax.lax.rsqrt(norm)).astype(out_ref.dtype)


def _round_up(x, m):
    return (x + m - 1) // m * m


# ---------------------------------------------------------------------------
# One ConvGDNBlock on an NHWC activation.  Returns NHWC.
# ---------------------------------------------------------------------------
def conv_gdn_block_nhwc(x, w, gamma, beta, stride, padding, *,
                        row_tile=256, lane=128, matmul_dtype=jnp.bfloat16):
    N, H, W, Cin = x.shape
    Cout, Cin_w, k, _ = w.shape
    assert Cin == Cin_w
    s, p = stride, padding
    Ho = (H + 2 * p - k) // s + 1
    Wo = (W + 2 * p - k) // s + 1

    # im2col as ONE fused XLA op.  Output feature order is (cin, ki, kj) — exactly
    # PyTorch's weight.reshape(Cout, Cin*k*k) order — and the feature axis is last.
    patches = jax.lax.conv_general_dilated_patches(
        x, (k, k), (s, s), [(p, p), (p, p)],
        dimension_numbers=("NHWC", "HWIO", "NHWC"))
    M, K = N * Ho * Wo, Cin * k * k
    patches = patches.reshape(M, K).astype(matmul_dtype)   # bf16 halves HBM traffic

    # Lane-align K and Cout (128) and pad M to the row tile.
    Kp = _round_up(K, lane)
    Cp = _round_up(Cout, lane)
    tm = min(row_tile, _round_up(M, 8))      # sublane-aligned row tile
    Mp = _round_up(M, tm)

    patches_p = jnp.pad(patches, ((0, Mp - M), (0, Kp - K)))
    w_p = jnp.pad(w.reshape(Cout, K).T.astype(matmul_dtype),
                  ((0, Kp - K), (0, Cp - Cout)))
    gt_p = jnp.pad(gamma.T.astype(matmul_dtype),
                   ((0, Cp - Cout), (0, Cp - Cout)))
    # Pad beta with ones so padded lanes see a denominator of exactly 1 (no inf/NaN).
    beta_p = jnp.pad(beta.reshape(1, Cout).astype(jnp.float32),
                     ((0, 0), (0, Cp - Cout)), constant_values=1.0)

    out = pl.pallas_call(
        _conv_gdn_kernel,
        out_shape=jax.ShapeDtypeStruct((Mp, Cp), jnp.float32),
        grid=(Mp // tm,),
        in_specs=[
            pl.BlockSpec((tm, Kp), lambda i: (i, 0)),     # patches row-block
            pl.BlockSpec((Kp, Cp), lambda i: (0, 0)),     # conv weight (resident)
            pl.BlockSpec((Cp, Cp), lambda i: (0, 0)),     # gamma^T (resident)
            pl.BlockSpec((1, Cp), lambda i: (0, 0)),      # beta row (resident)
        ],
        out_specs=pl.BlockSpec((tm, Cp), lambda i: (i, 0)),
        compiler_params=pltpu.CompilerParams(
            dimension_semantics=("parallel",),            # shards across v7x's 2 TCs
            vmem_limit_bytes=32 * 1024 * 1024),           # explicit; tiles use << this
    )(patches_p, w_p, gt_p, beta_p)

    return out[:M, :Cout].reshape(N, Ho, Wo, Cout)


# ---------------------------------------------------------------------------
# Network wrapper: NCHW in / NCHW out, NHWC internally.
# ---------------------------------------------------------------------------
def analysis_network_cnn(x_nchw, params):
    x = jnp.transpose(x_nchw, (0, 2, 3, 1))               # NCHW -> NHWC, once
    for prm in params:
        x = conv_gdn_block_nhwc(x, prm["w"], prm["gamma"], prm["beta"],
                                prm["stride"], prm["padding"])
    return jnp.transpose(x, (0, 3, 1, 2))                 # NHWC -> NCHW, once


def init_params(latent_channels, key):
    """Deterministic parameter init mirroring the module's __init__ shapes."""
    block_params = [
        (3, latent_channels * 4, 5, 2, 2),
        (latent_channels * 4, latent_channels * 2, 5, 2, 3),
        (latent_channels * 2, latent_channels, 2, 1, 0),
    ]
    params = []
    for (cin, cout, k, s, p) in block_params:
        key, wk = jax.random.split(key)
        fan_out = cout * k * k
        std = (2.0 / fan_out) ** 0.5                      # kaiming_normal, fan_out
        w = std * jax.random.normal(wk, (cout, cin, k, k), dtype=jnp.float32)
        gamma = 0.1 * jnp.eye(cout, dtype=jnp.float32)    # GDN default init
        beta = jnp.ones((cout,), dtype=jnp.float32)
        params.append(dict(w=w, gamma=gamma, beta=beta, stride=s, padding=p))
    return params


# ---------------------------------------------------------------------------
# Pure-JAX reference (f32, HIGHEST precision) for a correctness sanity check.
# ---------------------------------------------------------------------------
def reference_forward(x_nchw, params):
    x = x_nchw
    for prm in params:
        s, p = prm["stride"], prm["padding"]
        y = jax.lax.conv_general_dilated(
            x, prm["w"], (s, s), [(p, p), (p, p)],
            dimension_numbers=("NCHW", "OIHW", "NCHW"),
            precision=jax.lax.Precision.HIGHEST)
        norm = jnp.einsum("ij,njhw->nihw", prm["gamma"], y * y,
                          precision=jax.lax.Precision.HIGHEST)
        norm = norm + prm["beta"][None, :, None, None]
        x = y / jnp.sqrt(norm)
    return x


if __name__ == "__main__":
    key = jax.random.PRNGKey(0)
    key, xk = jax.random.split(key)

    latent_channels = 4
    x = jax.random.normal(xk, (2, 3, 16, 16), dtype=jnp.float32)  # NCHW input

    params = init_params(latent_channels, key)

    fwd = jax.jit(lambda inp: analysis_network_cnn(inp, params))
    y = fwd(x)
    jax.block_until_ready(y)

    # expected output: [2, latent_channels, 4, 4]
    assert y.shape == (2, latent_channels, 4, 4), y.shape
    assert bool(jnp.all(jnp.isfinite(y)))

    # Correctness vs f32 reference (kernel uses bf16 matmul operands -> loose-ish bound).
    y_ref = reference_forward(x, params)
    err = float(jnp.max(jnp.abs(y - y_ref)))
    scale = float(jnp.max(jnp.abs(y_ref))) + 1e-6
    assert err <= 0.1 * scale + 1e-3, (err, scale)

    print("KERNEL_OK")
</pallas_src>

<mosaic_0001>
module attributes {stable_mosaic.version = 11 : i64} {
  func.func @_conv_gdn_kernel(%arg0: i32, %arg1: memref<128x128xbf16, #tpu.memory_space<vmem>>, %arg2: memref<128x128xbf16, #tpu.memory_space<vmem>>, %arg3: memref<128x128xbf16, #tpu.memory_space<vmem>>, %arg4: memref<1x128xf32, #tpu.memory_space<vmem>>, %arg5: memref<128x128xf32, #tpu.memory_space<vmem>>) attributes {dimension_semantics = [#tpu.dimension_semantics<parallel>], iteration_bounds = array<i64: 1>, scalar_prefetch = 0 : i64, scratch_operands = 0 : i64, tpu.core_type = #tpu.core_type<tc>, window_params = [{transform_indices = @transform_0, window_bounds = array<i64: 128, 128>}, {pipeline_mode = #tpu.pipeline_mode<synchronous>, transform_indices = @transform_1, window_bounds = array<i64: 128, 128>}, {pipeline_mode = #tpu.pipeline_mode<synchronous>, transform_indices = @transform_2, window_bounds = array<i64: 128, 128>}, {pipeline_mode = #tpu.pipeline_mode<synchronous>, transform_indices = @transform_3, window_bounds = array<i64: 1, 128>}, {transform_indices = @transform_4, window_bounds = array<i64: 128, 128>}]} {
    %c0 = arith.constant 0 : index
    %c0_0 = arith.constant 0 : index
    %0 = vector.load %arg1[%c0, %c0_0] : memref<128x128xbf16, #tpu.memory_space<vmem>>, vector<128x128xbf16>
    %c0_1 = arith.constant 0 : index
    %c0_2 = arith.constant 0 : index
    %1 = vector.load %arg2[%c0_1, %c0_2] : memref<128x128xbf16, #tpu.memory_space<vmem>>, vector<128x128xbf16>
    %cst = arith.constant dense<0.000000e+00> : vector<128x128xf32>
    %2 = tpu.matmul %0, %1, %cst {dimension_numbers = #tpu.dot_dimension_numbers<[1], [0], [0], [1], [0, 0, 1, 1], [], []>} : vector<128x128xbf16>, vector<128x128xbf16>, vector<128x128xf32> -> vector<128x128xf32>
    %3 = arith.mulf %2, %2 : vector<128x128xf32>
    %4 = arith.truncf %3 : vector<128x128xf32> to vector<128x128xbf16>
    %c0_3 = arith.constant 0 : index
    %c0_4 = arith.constant 0 : index
    %5 = vector.load %arg3[%c0_3, %c0_4] : memref<128x128xbf16, #tpu.memory_space<vmem>>, vector<128x128xbf16>
    %cst_5 = arith.constant dense<0.000000e+00> : vector<128x128xf32>
    %6 = tpu.matmul %4, %5, %cst_5 {dimension_numbers = #tpu.dot_dimension_numbers<[1], [0], [0], [1], [0, 0, 1, 1], [], []>} : vector<128x128xbf16>, vector<128x128xbf16>, vector<128x128xf32> -> vector<128x128xf32>
    %c0_6 = arith.constant 0 : index
    %c0_7 = arith.constant 0 : index
    %7 = vector.load %arg4[%c0_6, %c0_7] : memref<1x128xf32, #tpu.memory_space<vmem>>, vector<1x128xf32>
    %8 = vector.broadcast %7 : vector<1x128xf32> to vector<128x128xf32>
    %9 = arith.addf %6, %8 : vector<128x128xf32>
    %cst_8 = arith.constant 9.99999997E-7 : f32
    %10 = vector.broadcast %cst_8 : f32 to vector<128x128xf32>
    %11 = arith.maximumf %9, %10 : vector<128x128xf32>
    %12 = math.rsqrt %11 : vector<128x128xf32>
    %13 = arith.mulf %2, %12 : vector<128x128xf32>
    %c0_9 = arith.constant 0 : index
    %c0_10 = arith.constant 0 : index
    %14 = vector.load %arg5[%c0_9, %c0_10] : memref<128x128xf32, #tpu.memory_space<vmem>>, vector<128x128xf32>
    tpu.vector_store %arg5[%c0_9, %c0_10], %13 {strides = array<i32>} : memref<128x128xf32, #tpu.memory_space<vmem>>, vector<128x128xf32>,
    return
  }
  func.func @transform_0(%arg0: i32) -> (i32, i32) {
    %c0_i32 = arith.constant 0 : i32
    %c0_i32_0 = arith.constant 0 : i32
    return %arg0, %c0_i32 : i32, i32
  }
  func.func @transform_1(%arg0: i32) -> (i32, i32) {
    %c0_i32 = arith.constant 0 : i32
    %c0_i32_0 = arith.constant 0 : i32
    %c0_i32_1 = arith.constant 0 : i32
    return %c0_i32, %c0_i32_0 : i32, i32
  }
  func.func @transform_2(%arg0: i32) -> (i32, i32) {
    %c0_i32 = arith.constant 0 : i32
    %c0_i32_0 = arith.constant 0 : i32
    %c0_i32_1 = arith.constant 0 : i32
    return %c0_i32, %c0_i32_0 : i32, i32
  }
  func.func @transform_3(%arg0: i32) -> (i32, i32) {
    %c0_i32 = arith.constant 0 : i32
    %c0_i32_0 = arith.constant 0 : i32
    %c0_i32_1 = arith.constant 0 : i32
    return %c0_i32, %c0_i32_0 : i32, i32
  }
  func.func @transform_4(%arg0: i32) -> (i32, i32) {
    %c0_i32 = arith.constant 0 : i32
    %c0_i32_0 = arith.constant 0 : i32
    return %arg0, %c0_i32 : i32, i32
  }
}

module attributes {stable_mosaic.version = 11 : i64} {
  func.func @_conv_gdn_kernel(%arg0: i32, %arg1: memref<56x512xbf16, #tpu.memory_space<vmem>>, %arg2: memref<512x128xbf16, #tpu.memory_space<vmem>>, %arg3: memref<128x128xbf16, #tpu.memory_space<vmem>>, %arg4: memref<1x128xf32, #tpu.memory_space<vmem>>, %arg5: memref<56x128xf32, #tpu.memory_space<vmem>>) attributes {dimension_semantics = [#tpu.dimension_semantics<parallel>], iteration_bounds = array<i64: 1>, scalar_prefetch = 0 : i64, scratch_operands = 0 : i64, tpu.core_type = #tpu.core_type<tc>, window_params = [{transform_indices = @transform_0, window_bounds = array<i64: 56, 512>}, {pipeline_mode = #tpu.pipeline_mode<synchronous>, transform_indices = @transform_1, window_bounds = array<i64: 512, 128>}, {pipeline_mode = #tpu.pipeline_mode<synchronous>, transform_indices = @transform_2, window_bounds = array<i64: 128, 128>}, {pipeline_mode = #tpu.pipeline_mode<synchronous>, transform_indices = @transform_3, window_bounds = array<i64: 1, 128>}, {transform_indices = @transform_4, window_bounds = array<i64: 56, 128>}]} {
    %c0 = arith.constant 0 : index
    %c0_0 = arith.constant 0 : index
    %0 = vector.load %arg1[%c0, %c0_0] : memref<56x512xbf16, #tpu.memory_space<vmem>>, vector<56x512xbf16>
    %c0_1 = arith.constant 0 : index
    %c0_2 = arith.constant 0 : index
    %1 = vector.load %arg2[%c0_1, %c0_2] : memref<512x128xbf16, #tpu.memory_space<vmem>>, vector<512x128xbf16>
    %cst = arith.constant dense<0.000000e+00> : vector<56x128xf32>
    %2 = tpu.matmul %0, %1, %cst {dimension_numbers = #tpu.dot_dimension_numbers<[1], [0], [0], [1], [0, 0, 1, 1], [], []>} : vector<56x512xbf16>, vector<512x128xbf16>, vector<56x128xf32> -> vector<56x128xf32>
    %3 = arith.mulf %2, %2 : vector<56x128xf32>
    %4 = arith.truncf %3 : vector<56x128xf32> to vector<56x128xbf16>
    %c0_3 = arith.constant 0 : index
    %c0_4 = arith.constant 0 : index
    %5 = vector.load %arg3[%c0_3, %c0_4] : memref<128x128xbf16, #tpu.memory_space<vmem>>, vector<128x128xbf16>
    %cst_5 = arith.constant dense<0.000000e+00> : vector<56x128xf32>
    %6 = tpu.matmul %4, %5, %cst_5 {dimension_numbers = #tpu.dot_dimension_numbers<[1], [0], [0], [1], [0, 0, 1, 1], [], []>} : vector<56x128xbf16>, vector<128x128xbf16>, vector<56x128xf32> -> vector<56x128xf32>
    %c0_6 = arith.constant 0 : index
    %c0_7 = arith.constant 0 : index
    %7 = vector.load %arg4[%c0_6, %c0_7] : memref<1x128xf32, #tpu.memory_space<vmem>>, vector<1x128xf32>
    %8 = vector.broadcast %7 : vector<1x128xf32> to vector<56x128xf32>
    %9 = arith.addf %6, %8 : vector<56x128xf32>
    %cst_8 = arith.constant 9.99999997E-7 : f32
    %10 = vector.broadcast %cst_8 : f32 to vector<56x128xf32>
    %11 = arith.maximumf %9, %10 : vector<56x128xf32>
    %12 = math.rsqrt %11 : vector<56x128xf32>
    %13 = arith.mulf %2, %12 : vector<56x128xf32>
    %c0_9 = arith.constant 0 : index
    %c0_10 = arith.constant 0 : index
    %14 = vector.load %arg5[%c0_9, %c0_10] : memref<56x128xf32, #tpu.memory_space<vmem>>, vector<56x128xf32>
    tpu.vector_store %arg5[%c0_9, %c0_10], %13 {strides = array<i32>} : memref<56x128xf32, #tpu.memory_space<vmem>>, vector<56x128xf32>,
    return
  }
  func.func @transform_0(%arg0: i32) -> (i32, i32) {
    %c0_i32 = arith.constant 0 : i32
    %c0_i32_0 = arith.constant 0 : i32
    return %arg0, %c0_i32 : i32, i32
  }
  func.func @transform_1(%arg0: i32) -> (i32, i32) {
    %c0_i32 = arith.constant 0 : i32
    %c0_i32_0 = arith.constant 0 : i32
    %c0_i32_1 = arith.constant 0 : i32
    return %c0_i32, %c0_i32_0 : i32, i32
  }
  func.func @transform_2(%arg0: i32) -> (i32, i32) {
    %c0_i32 = arith.constant 0 : i32
    %c0_i32_0 = arith.constant 0 : i32
    %c0_i32_1 = arith.constant 0 : i32
    return %c0_i32, %c0_i32_0 : i32, i32
  }
  func.func @transform_3(%arg0: i32) -> (i32, i32) {
    %c0_i32 = arith.constant 0 : i32
    %c0_i32_0 = arith.constant 0 : i32
    %c0_i32_1 = arith.constant 0 : i32
    return %c0_i32, %c0_i32_0 : i32, i32
  }
  func.func @transform_4(%arg0: i32) -> (i32, i32) {
    %c0_i32 = arith.constant 0 : i32
    %c0_i32_0 = arith.constant 0 : i32
    return %arg0, %c0_i32 : i32, i32
  }
}

module attributes {stable_mosaic.version = 11 : i64} {
  func.func @_conv_gdn_kernel(%arg0: i32, %arg1: memref<32x128xbf16, #tpu.memory_space<vmem>>, %arg2: memref<128x128xbf16, #tpu.memory_space<vmem>>, %arg3: memref<128x128xbf16, #tpu.memory_space<vmem>>, %arg4: memref<1x128xf32, #tpu.memory_space<vmem>>, %arg5: memref<32x128xf32, #tpu.memory_space<vmem>>) attributes {dimension_semantics = [#tpu.dimension_semantics<parallel>], iteration_bounds = array<i64: 1>, scalar_prefetch = 0 : i64, scratch_operands = 0 : i64, tpu.core_type = #tpu.core_type<tc>, window_params = [{transform_indices = @transform_0, window_bounds = array<i64: 32, 128>}, {pipeline_mode = #tpu.pipeline_mode<synchronous>, transform_indices = @transform_1, window_bounds = array<i64: 128, 128>}, {pipeline_mode = #tpu.pipeline_mode<synchronous>, transform_indices = @transform_2, window_bounds = array<i64: 128, 128>}, {pipeline_mode = #tpu.pipeline_mode<synchronous>, transform_indices = @transform_3, window_bounds = array<i64: 1, 128>}, {transform_indices = @transform_4, window_bounds = array<i64: 32, 128>}]} {
    %c0 = arith.constant 0 : index
    %c0_0 = arith.constant 0 : index
    %0 = vector.load %arg1[%c0, %c0_0] : memref<32x128xbf16, #tpu.memory_space<vmem>>, vector<32x128xbf16>
    %c0_1 = arith.constant 0 : index
    %c0_2 = arith.constant 0 : index
    %1 = vector.load %arg2[%c0_1, %c0_2] : memref<128x128xbf16, #tpu.memory_space<vmem>>, vector<128x128xbf16>
    %cst = arith.constant dense<0.000000e+00> : vector<32x128xf32>
    %2 = tpu.matmul %0, %1, %cst {dimension_numbers = #tpu.dot_dimension_numbers<[1], [0], [0], [1], [0, 0, 1, 1], [], []>} : vector<32x128xbf16>, vector<128x128xbf16>, vector<32x128xf32> -> vector<32x128xf32>
    %3 = arith.mulf %2, %2 : vector<32x128xf32>
    %4 = arith.truncf %3 : vector<32x128xf32> to vector<32x128xbf16>
    %c0_3 = arith.constant 0 : index
    %c0_4 = arith.constant 0 : index
    %5 = vector.load %arg3[%c0_3, %c0_4] : memref<128x128xbf16, #tpu.memory_space<vmem>>, vector<128x128xbf16>
    %cst_5 = arith.constant dense<0.000000e+00> : vector<32x128xf32>
    %6 = tpu.matmul %4, %5, %cst_5 {dimension_numbers = #tpu.dot_dimension_numbers<[1], [0], [0], [1], [0, 0, 1, 1], [], []>} : vector<32x128xbf16>, vector<128x128xbf16>, vector<32x128xf32> -> vector<32x128xf32>
    %c0_6 = arith.constant 0 : index
    %c0_7 = arith.constant 0 : index
    %7 = vector.load %arg4[%c0_6, %c0_7] : memref<1x128xf32, #tpu.memory_space<vmem>>, vector<1x128xf32>
    %8 = vector.broadcast %7 : vector<1x128xf32> to vector<32x128xf32>
    %9 = arith.addf %6, %8 : vector<32x128xf32>
    %cst_8 = arith.constant 9.99999997E-7 : f32
    %10 = vector.broadcast %cst_8 : f32 to vector<32x128xf32>
    %11 = arith.maximumf %9, %10 : vector<32x128xf32>
    %12 = math.rsqrt %11 : vector<32x128xf32>
    %13 = arith.mulf %2, %12 : vector<32x128xf32>
    %c0_9 = arith.constant 0 : index
    %c0_10 = arith.constant 0 : index
    %14 = vector.load %arg5[%c0_9, %c0_10] : memref<32x128xf32, #tpu.memory_space<vmem>>, vector<32x128xf32>
    tpu.vector_store %arg5[%c0_9, %c0_10], %13 {strides = array<i32>} : memref<32x128xf32, #tpu.memory_space<vmem>>, vector<32x128xf32>,
    return
  }
  func.func @transform_0(%arg0: i32) -> (i32, i32) {
    %c0_i32 = arith.constant 0 : i32
    %c0_i32_0 = arith.constant 0 : i32
    return %arg0, %c0_i32 : i32, i32
  }
  func.func @transform_1(%arg0: i32) -> (i32, i32) {
    %c0_i32 = arith.constant 0 : i32
    %c0_i32_0 = arith.constant 0 : i32
    %c0_i32_1 = arith.constant 0 : i32
    return %c0_i32, %c0_i32_0 : i32, i32
  }
  func.func @transform_2(%arg0: i32) -> (i32, i32) {
    %c0_i32 = arith.constant 0 : i32
    %c0_i32_0 = arith.constant 0 : i32
    %c0_i32_1 = arith.constant 0 : i32
    return %c0_i32, %c0_i32_0 : i32, i32
  }
  func.func @transform_3(%arg0: i32) -> (i32, i32) {
    %c0_i32 = arith.constant 0 : i32
    %c0_i32_0 = arith.constant 0 : i32
    %c0_i32_1 = arith.constant 0 : i32
    return %c0_i32, %c0_i32_0 : i32, i32
  }
  func.func @transform_4(%arg0: i32) -> (i32, i32) {
    %c0_i32 = arith.constant 0 : i32
    %c0_i32_0 = arith.constant 0 : i32
    return %arg0, %c0_i32 : i32, i32
  }
}

</mosaic_0001>

<llo_original>
// kernel: _lambda_.3
$region0: #{_lambda_.3}
  #allocation0 [shape = 'u32[]', space=smem, size = 0x4, offset = 0x4, fixed_abs, tag = 'smem constant byte address 0x4 - core index']
  #allocation1 [shape = 'u32[144,128]{1,0:T(1,128)}', space=vmem, size = 0x12000, scoped, tag = 'internal scratch']
  %s0 = inlined_call_operand.vmem [shape: bf16[128,128], index: 0, kind: input, shape index: {}]
  %s1 = inlined_call_operand.vmem [shape: bf16[128,128], index: 1, kind: input, shape index: {}]
  %s2 = inlined_call_operand.vmem [shape: bf16[128,128], index: 2, kind: input, shape index: {}]
  %s3 = inlined_call_operand.vmem [shape: f32[1,128], index: 3, kind: input, shape index: {}]
  %s4 = inlined_call_operand.vmem [shape: f32[128,128], index: 4, kind: output, shape index: {}]
  %s5 = sld [smem:[#allocation0]]
  $region26: #{_lambda_.3} parent=0
    _
  %s7 = ssub.s32 1, %s5
  %s8 = scalar_select 0, %s7, %s5
  // Predicated region
  $region2: #{_lambda_.3} parent=0 // pred_check
    _
  $region3: #{_lambda_.3} parent=0 // pred_check_branch
    %10 = sbr.rel (0) target = $region5
  $region4: #{_lambda_.3} parent=0 // pred_region
    _
  $region5: #{_lambda_.3} parent=0 // pred_fallthru
    _
  // Predicated region
  $region6: #{_lambda_.3} parent=0 // pred_check
    _
  $region7: #{_lambda_.3} parent=0 // pred_check_branch
    %12 = sbr.rel (0) target = $region9
  $region8: #{_lambda_.3} parent=0 // pred_region
    _
  $region9: #{_lambda_.3} parent=0 // pred_fallthru
    _
  // Predicated region
  $region10: #{_lambda_.3} parent=0 // pred_check
    _
  $region11: #{_lambda_.3} parent=0 // pred_check_branch
    %14 = sbr.rel (0) target = $region13
  $region12: #{_lambda_.3} parent=0 // pred_region
    _
  $region13: #{_lambda_.3} parent=0 // pred_fallthru
    _
  // Predicated region
  $region14: #{_lambda_.3} parent=0 // pred_check
    _
  $region15: #{_lambda_.3} parent=0 // pred_check_branch
    %16 = sbr.rel (0) target = $region17
  $region16: #{_lambda_.3} parent=0 // pred_region
    _
  $region17: #{_lambda_.3} parent=0 // pred_fallthru
    _
  %v18 = vld [vmem:[%s0] sm:$0xf]
  %v19 = vld [vmem:[%s0 + $0x4] sm:$0xf]
  %v20 = vld [vmem:[%s0 + $0x8] sm:$0xf]
  %v21 = vld [vmem:[%s0 + $0xc] sm:$0xf]
  %v22 = vld [vmem:[%s0 + $0x10] sm:$0xf]
  %v23 = vld [vmem:[%s0 + $0x14] sm:$0xf]
  %v24 = vld [vmem:[%s0 + $0x18] sm:$0xf]
  %v25 = vld [vmem:[%s0 + $0x1c] sm:$0xf]
  %v26 = vld [vmem:[%s0 + $0x20] sm:$0xf]
  %v27 = vld [vmem:[%s0 + $0x24] sm:$0xf]
  %v28 = vld [vmem:[%s0 + $0x28] sm:$0xf]
  %v29 = vld [vmem:[%s0 + $0x2c] sm:$0xf]
  %v30 = vld [vmem:[%s0 + $0x30] sm:$0xf]
  %v31 = vld [vmem:[%s0 + $0x34] sm:$0xf]
  %v32 = vld [vmem:[%s0 + $0x38] sm:$0xf]
  %v33 = vld [vmem:[%s0 + $0x3c] sm:$0xf]
  %v34 = vld [vmem:[%s1] sm:$0xf]
  %v35 = vld [vmem:[%s1 + $0x4] sm:$0xf]
  %v36 = vld [vmem:[%s1 + $0x8] sm:$0xf]
  %v37 = vld [vmem:[%s1 + $0xc] sm:$0xf]
  %v38 = vld [vmem:[%s1 + $0x10] sm:$0xf]
  %v39 = vld [vmem:[%s1 + $0x14] sm:$0xf]
  %v40 = vld [vmem:[%s1 + $0x18] sm:$0xf]
  %v41 = vld [vmem:[%s1 + $0x1c] sm:$0xf]
  %v42 = vld [vmem:[%s1 + $0x20] sm:$0xf]
  %v43 = vld [vmem:[%s1 + $0x24] sm:$0xf]
  %v44 = vld [vmem:[%s1 + $0x28] sm:$0xf]
  %v45 = vld [vmem:[%s1 + $0x2c] sm:$0xf]
  %v46 = vld [vmem:[%s1 + $0x30] sm:$0xf]
  %v47 = vld [vmem:[%s1 + $0x34] sm:$0xf]
  %v48 = vld [vmem:[%s1 + $0x38] sm:$0xf]
  %v49 = vld [vmem:[%s1 + $0x3c] sm:$0xf]
  %v66 = vunpack.c.l.b16 %v18
  %v67 = vunpack.c.l.b16 %v19
  %v68 = vunpack.c.l.b16 %v20
  %v69 = vunpack.c.l.b16 %v21
  %v70 = vunpack.c.l.b16 %v22
  %v71 = vunpack.c.l.b16 %v23
  %v72 = vunpack.c.l.b16 %v24
  %v73 = vunpack.c.l.b16 %v25
  %v74 = vunpack.c.l.b16 %v26
  %v75 = vunpack.c.l.b16 %v27
  %v76 = vunpack.c.l.b16 %v28
  %v77 = vunpack.c.l.b16 %v29
  %v78 = vunpack.c.l.b16 %v30
  %v79 = vunpack.c.l.b16 %v31
  %v80 = vunpack.c.l.b16 %v32
  %v81 = vunpack.c.l.b16 %v33
  %v82 = vpack.c.b16 %v67, %v66
  %v83 = vpack.c.b16 %v69, %v68
  %v84 = vpack.c.b16 %v71, %v70
  %v85 = vpack.c.b16 %v73, %v72
  %v86 = vpack.c.b16 %v75, %v74
  %v87 = vpack.c.b16 %v77, %v76
  %v88 = vpack.c.b16 %v79, %v78
  %v89 = vpack.c.b16 %v81, %v80
  %v114 = vunpack.c.l.b16 %v34
  %v115 = vunpack.c.l.b16 %v35
  %v116 = vunpack.c.l.b16 %v36
  %v117 = vunpack.c.l.b16 %v37
  %v118 = vunpack.c.l.b16 %v38
  %v119 = vunpack.c.l.b16 %v39
  %v120 = vunpack.c.l.b16 %v40
  %v121 = vunpack.c.l.b16 %v41
  %v122 = vunpack.c.l.b16 %v42
  %v123 = vunpack.c.l.b16 %v43
  %v124 = vunpack.c.l.b16 %v44
  %v125 = vunpack.c.l.b16 %v45
  %v126 = vunpack.c.l.b16 %v46
  %v127 = vunpack.c.l.b16 %v47
  %v128 = vunpack.c.l.b16 %v48
  %v129 = vunpack.c.l.b16 %v49
  %v130 = vpack.c.b16 %v115, %v114
  %v131 = vpack.c.b16 %v117, %v116
  %v132 = vpack.c.b16 %v119, %v118
  %v133 = vpack.c.b16 %v121, %v120
  %v134 = vpack.c.b16 %v123, %v122
  %v135 = vpack.c.b16 %v125, %v124
  %v136 = vpack.c.b16 %v127, %v126
  %v137 = vpack.c.b16 %v129, %v128
  %146 = vmatprep.subr.bf16.mxu0 0
  %147 = vmatpush1.bf16.msra.mxu0 %v137
  %148 = vmatprep.subr.bf16.mxu0 0
  %149 = vmatpush1.bf16.msra.mxu0 %v136
  %150 = vmatprep.subr.bf16.mxu0 0
  %151 = vmatpush1.bf16.msra.mxu0 %v135
  %152 = vmatprep.subr.bf16.mxu0 0
  %153 = vmatpush1.bf16.msra.mxu0 %v134
  %154 = vmatprep.subr.bf16.mxu0 0
  %155 = vmatpush1.bf16.msra.mxu0 %v133
  %156 = vmatprep.subr.bf16.mxu0 0
  %157 = vmatpush1.bf16.msra.mxu0 %v132
  %158 = vmatprep.subr.bf16.mxu0 0
  %159 = vmatpush1.bf16.msra.mxu0 %v131
  %160 = vmatprep.subr.bf16.mxu0 0
  %161 = vmatpush1.bf16.msra.mxu0 %v130
  %162 = vmatprep.subr.bf16.mxu0 0
  %163 = vmatpush2.bf16.msra.mxu0 0
  %164 = vmatprep.subr.bf16.mxu0 0
  %165 = vmatpush2.bf16.msra.mxu0 0
  %166 = vmatprep.subr.bf16.mxu0 0
  %167 = vmatpush2.bf16.msra.mxu0 0
  %168 = vmatprep.subr.bf16.mxu0 0
  %169 = vmatpush2.bf16.msra.mxu0 0
  %170 = vmatprep.subr.bf16.mxu0 0
  %171 = vmatpush2.bf16.msra.mxu0 0
  %172 = vmatprep.subr.bf16.mxu0 0
  %173 = vmatpush2.bf16.msra.mxu0 0
  %174 = vmatprep.subr.bf16.mxu0 0
  %175 = vmatpush2.bf16.msra.mxu0 0
  %176 = vmatprep.subr.bf16.mxu0 0
  %177 = vmatpush2.bf16.msra.mxu0 0
  %178 = vmatprep.mubr.bf16.mxu0 0
  %179 = vmatmul.mubr.bf16.gmra.mxu0 %v82
  %v180 = vpop.f32.mrf.mxu0
  %v181 = vadd.f32 0.0, %v180
  %v182 = vpop.f32.mrf.mxu0
  %v183 = vpop.f32.mrf.mxu0
  %v184 = vadd.f32 0.0, %v183
  %v185 = vpop.f32.mrf.mxu0
  %186 = vmatprep.mubr.bf16.mxu0 0
  %187 = vmatmul.mubr.bf16.gmra.mxu0 %v83
  %v188 = vpop.f32.mrf.mxu0
  %v189 = vadd.f32 0.0, %v188
  %v190 = vpop.f32.mrf.mxu0
  %v191 = vpop.f32.mrf.mxu0
  %v192 = vadd.f32 0.0, %v191
  %v193 = vpop.f32.mrf.mxu0
  %194 = vmatprep.mubr.bf16.mxu0 0
  %195 = vmatmul.mubr.bf16.gmra.mxu0 %v84
  %v196 = vpop.f32.mrf.mxu0
  %v197 = vadd.f32 0.0, %v196
  %v198 = vpop.f32.mrf.mxu0
  %v199 = vpop.f32.mrf.mxu0
  %v200 = vadd.f32 0.0, %v199
  %v201 = vpop.f32.mrf.mxu0
  %202 = vmatprep.mubr.bf16.mxu0 0
  %203 = vmatmul.mubr.bf16.gmra.mxu0 %v85
  %v204 = vpop.f32.mrf.mxu0
  %v205 = vadd.f32 0.0, %v204
  %v206 = vpop.f32.mrf.mxu0
  %v207 = vpop.f32.mrf.mxu0
  %v208 = vadd.f32 0.0, %v207
  %v209 = vpop.f32.mrf.mxu0
  %210 = vmatprep.mubr.bf16.mxu0 0
  %211 = vmatmul.mubr.bf16.gmra.mxu0 %v86
  %v212 = vpop.f32.mrf.mxu0
  %v213 = vadd.f32 0.0, %v212
  %v214 = vpop.f32.mrf.mxu0
  %v215 = vpop.f32.mrf.mxu0
  %v216 = vadd.f32 0.0, %v215
  %v217 = vpop.f32.mrf.mxu0
  %218 = vmatprep.mubr.bf16.mxu0 0
  %219 = vmatmul.mubr.bf16.gmra.mxu0 %v87
  %v220 = vpop.f32.mrf.mxu0
  %v221 = vadd.f32 0.0, %v220
  %v222 = vpop.f32.mrf.mxu0
  %v223 = vpop.f32.mrf.mxu0
  %v224 = vadd.f32 0.0, %v223
  %v225 = vpop.f32.mrf.mxu0
  %226 = vmatprep.mubr.bf16.mxu0 0
  %227 = vmatmul.mubr.bf16.gmra.mxu0 %v88
  %v228 = vpop.f32.mrf.mxu0
  %v229 = vadd.f32 0.0, %v228
  %v230 = vpop.f32.mrf.mxu0
  %v231 = vpop.f32.mrf.mxu0
  %v232 = vadd.f32 0.0, %v231
  %v233 = vpop.f32.mrf.mxu0
  %234 = vmatprep.mubr.bf16.mxu0 0
  %235 = vmatmul.mubr.bf16.gmra.mxu0 %v89
  %v236 = vpop.f32.mrf.mxu0
  %v237 = vadd.f32 0.0, %v236
  %v238 = vpop.f32.mrf.mxu0
  %v239 = vpop.f32.mrf.mxu0
  %v240 = vadd.f32 0.0, %v239
  %v241 = vpop.f32.mrf.mxu0
  %242 = vdwg.mxu0
  %v243 = vmul.f32 %v181, %v181
  %v244 = vmul.f32 %v184, %v184
  %v245 = vmul.f32 %v189, %v189
  %v246 = vmul.f32 %v192, %v192
  %v247 = vmul.f32 %v197, %v197
  %v248 = vmul.f32 %v200, %v200
  %v249 = vmul.f32 %v205, %v205
  %v250 = vmul.f32 %v208, %v208
  %v251 = vmul.f32 %v213, %v213
  %v252 = vmul.f32 %v216, %v216
  %v253 = vmul.f32 %v221, %v221
  %v254 = vmul.f32 %v224, %v224
  %v255 = vmul.f32 %v229, %v229
  %v256 = vmul.f32 %v232, %v232
  %v257 = vmul.f32 %v237, %v237
  %v258 = vmul.f32 %v240, %v240
  %v259 = vpack.c.bf16 %v244, %v243
  %v260 = vpack.c.bf16 %v246, %v245
  %v261 = vpack.c.bf16 %v248, %v247
  %v262 = vpack.c.bf16 %v250, %v249
  %v263 = vpack.c.bf16 %v252, %v251
  %v264 = vpack.c.bf16 %v254, %v253
  %v265 = vpack.c.bf16 %v256, %v255
  %v266 = vpack.c.bf16 %v258, %v257
  %v267 = vld [vmem:[%s2] sm:$0xf]
  %v268 = vld [vmem:[%s2 + $0x4] sm:$0xf]
  %v269 = vld [vmem:[%s2 + $0x8] sm:$0xf]
  %v270 = vld [vmem:[%s2 + $0xc] sm:$0xf]
  %v271 = vld [vmem:[%s2 + $0x10] sm:$0xf]
  %v272 = vld [vmem:[%s2 + $0x14] sm:$0xf]
  %v273 = vld [vmem:[%s2 + $0x18] sm:$0xf]
  %v274 = vld [vmem:[%s2 + $0x1c] sm:$0xf]
  %v275 = vld [vmem:[%s2 + $0x20] sm:$0xf]
  %v276 = vld [vmem:[%s2 + $0x24] sm:$0xf]
  %v277 = vld [vmem:[%s2 + $0x28] sm:$0xf]
  %v278 = vld [vmem:[%s2 + $0x2c] sm:$0xf]
  %v279 = vld [vmem:[%s2 + $0x30] sm:$0xf]
  %v280 = vld [vmem:[%s2 + $0x34] sm:$0xf]
  %v281 = vld [vmem:[%s2 + $0x38] sm:$0xf]
  %v282 = vld [vmem:[%s2 + $0x3c] sm:$0xf]
  %v283 = vld [vmem:[%s3] sm:$0x1]
  %v285 = vlaneseq
  %v286 = vshrl.u32 %v285, 7
  %v287 = vsub.s32 0, %v286
  %v288 = vrot.slane %v283, %v287
  %v306 = vunpack.c.l.b16 %v267
  %v307 = vunpack.c.l.b16 %v268
  %v308 = vunpack.c.l.b16 %v269
  %v309 = vunpack.c.l.b16 %v270
  %v310 = vunpack.c.l.b16 %v271
  %v311 = vunpack.c.l.b16 %v272
  %v312 = vunpack.c.l.b16 %v273
  %v313 = vunpack.c.l.b16 %v274
  %v314 = vunpack.c.l.b16 %v275
  %v315 = vunpack.c.l.b16 %v276
  %v316 = vunpack.c.l.b16 %v277
  %v317 = vunpack.c.l.b16 %v278
  %v318 = vunpack.c.l.b16 %v279
  %v319 = vunpack.c.l.b16 %v280
  %v320 = vunpack.c.l.b16 %v281
  %v321 = vunpack.c.l.b16 %v282
  %v322 = vpack.c.b16 %v307, %v306
  %v323 = vpack.c.b16 %v309, %v308
  %v324 = vpack.c.b16 %v311, %v310
  %v325 = vpack.c.b16 %v313, %v312
  %v326 = vpack.c.b16 %v315, %v314
  %v327 = vpack.c.b16 %v317, %v316
  %v328 = vpack.c.b16 %v319, %v318
  %v329 = vpack.c.b16 %v321, %v320
  %338 = vmatprep.subr.bf16.mxu0 0
  %339 = vmatpush1.bf16.msra.mxu0 %v329
  %340 = vmatprep.subr.bf16.mxu0 0
  %341 = vmatpush1.bf16.msra.mxu0 %v328
  %342 = vmatprep.subr.bf16.mxu0 0
  %343 = vmatpush1.bf16.msra.mxu0 %v327
  %344 = vmatprep.subr.bf16.mxu0 0
  %345 = vmatpush1.bf16.msra.mxu0 %v326
  %346 = vmatprep.subr.bf16.mxu0 0
  %347 = vmatpush1.bf16.msra.mxu0 %v325
  %348 = vmatprep.subr.bf16.mxu0 0
  %349 = vmatpush1.bf16.msra.mxu0 %v324
  %350 = vmatprep.subr.bf16.mxu0 0
  %351 = vmatpush1.bf16.msra.mxu0 %v323
  %352 = vmatprep.subr.bf16.mxu0 0
  %353 = vmatpush1.bf16.msra.mxu0 %v322
  %354 = vmatprep.subr.bf16.mxu0 0
  %355 = vmatpush2.bf16.msra.mxu0 0
  %356 = vmatprep.subr.bf16.mxu0 0
  %357 = vmatpush2.bf16.msra.mxu0 0
  %358 = vmatprep.subr.bf16.mxu0 0
  %359 = vmatpush2.bf16.msra.mxu0 0
  %360 = vmatprep.subr.bf16.mxu0 0
  %361 = vmatpush2.bf16.msra.mxu0 0
  %362 = vmatprep.subr.bf16.mxu0 0
  %363 = vmatpush2.bf16.msra.mxu0 0
  %364 = vmatprep.subr.bf16.mxu0 0
  %365 = vmatpush2.bf16.msra.mxu0 0
  %366 = vmatprep.subr.bf16.mxu0 0
  %367 = vmatpush2.bf16.msra.mxu0 0
  %368 = vmatprep.subr.bf16.mxu0 0
  %369 = vmatpush2.bf16.msra.mxu0 0
  %370 = vmatprep.mubr.bf16.mxu0 0
  %371 = vmatmul.mubr.bf16.gmra.mxu0 %v259
  %v372 = vpop.f32.mrf.mxu0
  %v373 = vadd.f32 %v288, %v372
  %v374 = vpop.f32.mrf.mxu0
  %v375 = vpop.f32.mrf.mxu0
  %v376 = vadd.f32 %v288, %v375
  %v377 = vpop.f32.mrf.mxu0
  %378 = vmatprep.mubr.bf16.mxu0 0
  %379 = vmatmul.mubr.bf16.gmra.mxu0 %v260
  %v380 = vpop.f32.mrf.mxu0
  %v381 = vadd.f32 %v288, %v380
  %v382 = vpop.f32.mrf.mxu0
  %v383 = vpop.f32.mrf.mxu0
  %v384 = vadd.f32 %v288, %v383
  %v385 = vpop.f32.mrf.mxu0
  %386 = vmatprep.mubr.bf16.mxu0 0
  %387 = vmatmul.mubr.bf16.gmra.mxu0 %v261
  %v388 = vpop.f32.mrf.mxu0
  %v389 = vadd.f32 %v288, %v388
  %v390 = vpop.f32.mrf.mxu0
  %v391 = vpop.f32.mrf.mxu0
  %v392 = vadd.f32 %v288, %v391
  %v393 = vpop.f32.mrf.mxu0
  %394 = vmatprep.mubr.bf16.mxu0 0
  %395 = vmatmul.mubr.bf16.gmra.mxu0 %v262
  %v396 = vpop.f32.mrf.mxu0
  %v397 = vadd.f32 %v288, %v396
  %v398 = vpop.f32.mrf.mxu0
  %v399 = vpop.f32.mrf.mxu0
  %v400 = vadd.f32 %v288, %v399
  %v401 = vpop.f32.mrf.mxu0
  %402 = vmatprep.mubr.bf16.mxu0 0
  %403 = vmatmul.mubr.bf16.gmra.mxu0 %v263
  %v404 = vpop.f32.mrf.mxu0
  %v405 = vadd.f32 %v288, %v404
  %v406 = vpop.f32.mrf.mxu0
  %v407 = vpop.f32.mrf.mxu0
  %v408 = vadd.f32 %v288, %v407
  %v409 = vpop.f32.mrf.mxu0
  %410 = vmatprep.mubr.bf16.mxu0 0
  %411 = vmatmul.mubr.bf16.gmra.mxu0 %v264
  %v412 = vpop.f32.mrf.mxu0
  %v413 = vadd.f32 %v288, %v412
  %v414 = vpop.f32.mrf.mxu0
  %v415 = vpop.f32.mrf.mxu0
  %v416 = vadd.f32 %v288, %v415
  %v417 = vpop.f32.mrf.mxu0
  %418 = vmatprep.mubr.bf16.mxu0 0
  %419 = vmatmul.mubr.bf16.gmra.mxu0 %v265
  %v420 = vpop.f32.mrf.mxu0
  %v421 = vadd.f32 %v288, %v420
  %v422 = vpop.f32.mrf.mxu0
  %v423 = vpop.f32.mrf.mxu0
  %v424 = vadd.f32 %v288, %v423
  %v425 = vpop.f32.mrf.mxu0
  %426 = vmatprep.mubr.bf16.mxu0 0
  %427 = vmatmul.mubr.bf16.gmra.mxu0 %v266
  %v428 = vpop.f32.mrf.mxu0
  %v429 = vadd.f32 %v288, %v428
  %v430 = vpop.f32.mrf.mxu0
  %v431 = vpop.f32.mrf.mxu0
  %v432 = vadd.f32 %v288, %v431
  %v433 = vpop.f32.mrf.mxu0
  %434 = vdwg.mxu0
  %v435 = vmax.f32 %v373, 1e-06
  %v436 = vmax.f32 %v376, 1e-06
  %v437 = vmax.f32 %v381, 1e-06
  %v438 = vmax.f32 %v384, 1e-06
  %v439 = vmax.f32 %v389, 1e-06
  %v440 = vmax.f32 %v392, 1e-06
  %v441 = vmax.f32 %v397, 1e-06
  %v442 = vmax.f32 %v400, 1e-06
  %v443 = vmax.f32 %v405, 1e-06
  %v444 = vmax.f32 %v408, 1e-06
  %v445 = vmax.f32 %v413, 1e-06
  %v446 = vmax.f32 %v416, 1e-06
  %v447 = vmax.f32 %v421, 1e-06
  %v448 = vmax.f32 %v424, 1e-06
  %v449 = vmax.f32 %v429, 1e-06
  %v450 = vmax.f32 %v432, 1e-06
  %v451 = vrsqrt.pop %v435
  %v452 = vrsqrt.pop %v436
  %v453 = vrsqrt.pop %v437
  %v454 = vrsqrt.pop %v438
  %v455 = vrsqrt.pop %v439
  %v456 = vrsqrt.pop %v440
  %v457 = vrsqrt.pop %v441
  %v458 = vrsqrt.pop %v442
  %v459 = vrsqrt.pop %v443
  %v460 = vrsqrt.pop %v444
  %v461 = vrsqrt.pop %v445
  %v462 = vrsqrt.pop %v446
  %v463 = vrsqrt.pop %v447
  %v464 = vrsqrt.pop %v448
  %v465 = vrsqrt.pop %v449
  %v466 = vrsqrt.pop %v450
  %v467 = vmul.f32 %v181, %v451
  %v468 = vmul.f32 %v184, %v452
  %v469 = vmul.f32 %v189, %v453
  %v470 = vmul.f32 %v192, %v454
  %v471 = vmul.f32 %v197, %v455
  %v472 = vmul.f32 %v200, %v456
  %v473 = vmul.f32 %v205, %v457
  %v474 = vmul.f32 %v208, %v458
  %v475 = vmul.f32 %v213, %v459
  %v476 = vmul.f32 %v216, %v460
  %v477 = vmul.f32 %v221, %v461
  %v478 = vmul.f32 %v224, %v462
  %v479 = vmul.f32 %v229, %v463
  %v480 = vmul.f32 %v232, %v464
  %v481 = vmul.f32 %v237, %v465
  %v482 = vmul.f32 %v240, %v466
  %483 = vst [vmem:[%s4] sm:$0xff] %v467
  %484 = vst [vmem:[%s4 + $0x8] sm:$0xff] %v468
  %485 = vst [vmem:[%s4 + $0x10] sm:$0xff] %v469
  %486 = vst [vmem:[%s4 + $0x18] sm:$0xff] %v470
  %487 = vst [vmem:[%s4 + $0x20] sm:$0xff] %v471
  %488 = vst [vmem:[%s4 + $0x28] sm:$0xff] %v472
  %489 = vst [vmem:[%s4 + $0x30] sm:$0xff] %v473
  %490 = vst [vmem:[%s4 + $0x38] sm:$0xff] %v474
  %491 = vst [vmem:[%s4 + $0x40] sm:$0xff] %v475
  %492 = vst [vmem:[%s4 + $0x48] sm:$0xff] %v476
  %493 = vst [vmem:[%s4 + $0x50] sm:$0xff] %v477
  %494 = vst [vmem:[%s4 + $0x58] sm:$0xff] %v478
  %495 = vst [vmem:[%s4 + $0x60] sm:$0xff] %v479
  %496 = vst [vmem:[%s4 + $0x68] sm:$0xff] %v480
  %497 = vst [vmem:[%s4 + $0x70] sm:$0xff] %v481
  %498 = vst [vmem:[%s4 + $0x78] sm:$0xff] %v482
  // Predicated region
  $region18: #{_lambda_.3} parent=0 // pred_check
    _
  $region19: #{_lambda_.3} parent=0 // pred_check_branch
    %500 = sbr.rel (0) target = $region21
  $region20: #{_lambda_.3} parent=0 // pred_region
    _
  $region21: #{_lambda_.3} parent=0 // pred_fallthru
    _
  // Predicated region
  $region22: #{_lambda_.3} parent=0 // pred_check
    _
  $region23: #{_lambda_.3} parent=0 // pred_check_branch
    %502 = sbr.rel (0) target = $region25
  $region24: #{_lambda_.3} parent=0 // pred_region
    _
  $region25: #{_lambda_.3} parent=0 // pred_fallthru
    _

// kernel: _lambda_.5
$region0: #{_lambda_.5}
  #allocation0 [shape = 'u32[]', space=smem, size = 0x4, offset = 0x4, fixed_abs, tag = 'smem constant byte address 0x4 - core index']
  #allocation1 [shape = 'u32[144,128]{1,0:T(1,128)}', space=vmem, size = 0x12000, scoped, tag = 'internal scratch']
  %s0 = inlined_call_operand.vmem [shape: bf16[32,128], index: 0, kind: input, shape index: {}]
  %s1 = inlined_call_operand.vmem [shape: bf16[128,128], index: 1, kind: input, shape index: {}]
  %s2 = inlined_call_operand.vmem [shape: bf16[128,128], index: 2, kind: input, shape index: {}]
  %s3 = inlined_call_operand.vmem [shape: f32[1,128], index: 3, kind: input, shape index: {}]
  %s4 = inlined_call_operand.vmem [shape: f32[32,128], index: 4, kind: output, shape index: {}]
  %s5 = sld [smem:[#allocation0]]
  $region26: #{_lambda_.5} parent=0
    _
  %s7 = ssub.s32 1, %s5
  %s8 = scalar_select 0, %s7, %s5
  // Predicated region
  $region2: #{_lambda_.5} parent=0 // pred_check
    _
  $region3: #{_lambda_.5} parent=0 // pred_check_branch
    %10 = sbr.rel (0) target = $region5
  $region4: #{_lambda_.5} parent=0 // pred_region
    _
  $region5: #{_lambda_.5} parent=0 // pred_fallthru
    _
  // Predicated region
  $region6: #{_lambda_.5} parent=0 // pred_check
    _
  $region7: #{_lambda_.5} parent=0 // pred_check_branch
    %12 = sbr.rel (0) target = $region9
  $region8: #{_lambda_.5} parent=0 // pred_region
    _
  $region9: #{_lambda_.5} parent=0 // pred_fallthru
    _
  // Predicated region
  $region10: #{_lambda_.5} parent=0 // pred_check
    _
  $region11: #{_lambda_.5} parent=0 // pred_check_branch
    %14 = sbr.rel (0) target = $region13
  $region12: #{_lambda_.5} parent=0 // pred_region
    _
  $region13: #{_lambda_.5} parent=0 // pred_fallthru
    _
  // Predicated region
  $region14: #{_lambda_.5} parent=0 // pred_check
    _
  $region15: #{_lambda_.5} parent=0 // pred_check_branch
    %16 = sbr.rel (0) target = $region17
  $region16: #{_lambda_.5} parent=0 // pred_region
    _
  $region17: #{_lambda_.5} parent=0 // pred_fallthru
    _
  %v18 = vld [vmem:[%s0] sm:$0xf]
  %v19 = vld [vmem:[%s0 + $0x4] sm:$0xf]
  %v20 = vld [vmem:[%s0 + $0x8] sm:$0xf]
  %v21 = vld [vmem:[%s0 + $0xc] sm:$0xf]
  %v22 = vld [vmem:[%s1] sm:$0xf]
  %v23 = vld [vmem:[%s1 + $0x4] sm:$0xf]
  %v24 = vld [vmem:[%s1 + $0x8] sm:$0xf]
  %v25 = vld [vmem:[%s1 + $0xc] sm:$0xf]
  %v26 = vld [vmem:[%s1 + $0x10] sm:$0xf]
  %v27 = vld [vmem:[%s1 + $0x14] sm:$0xf]
  %v28 = vld [vmem:[%s1 + $0x18] sm:$0xf]
  %v29 = vld [vmem:[%s1 + $0x1c] sm:$0xf]
  %v30 = vld [vmem:[%s1 + $0x20] sm:$0xf]
  %v31 = vld [vmem:[%s1 + $0x24] sm:$0xf]
  %v32 = vld [vmem:[%s1 + $0x28] sm:$0xf]
  %v33 = vld [vmem:[%s1 + $0x2c] sm:$0xf]
  %v34 = vld [vmem:[%s1 + $0x30] sm:$0xf]
  %v35 = vld [vmem:[%s1 + $0x34] sm:$0xf]
  %v36 = vld [vmem:[%s1 + $0x38] sm:$0xf]
  %v37 = vld [vmem:[%s1 + $0x3c] sm:$0xf]
  %v42 = vunpack.c.l.b16 %v18
  %v43 = vunpack.c.l.b16 %v19
  %v44 = vunpack.c.l.b16 %v20
  %v45 = vunpack.c.l.b16 %v21
  %v46 = vpack.c.b16 %v43, %v42
  %v47 = vpack.c.b16 %v45, %v44
  %v66 = vunpack.c.l.b16 %v22
  %v67 = vunpack.c.l.b16 %v23
  %v68 = vunpack.c.l.b16 %v24
  %v69 = vunpack.c.l.b16 %v25
  %v70 = vunpack.c.l.b16 %v26
  %v71 = vunpack.c.l.b16 %v27
  %v72 = vunpack.c.l.b16 %v28
  %v73 = vunpack.c.l.b16 %v29
  %v74 = vunpack.c.l.b16 %v30
  %v75 = vunpack.c.l.b16 %v31
  %v76 = vunpack.c.l.b16 %v32
  %v77 = vunpack.c.l.b16 %v33
  %v78 = vunpack.c.l.b16 %v34
  %v79 = vunpack.c.l.b16 %v35
  %v80 = vunpack.c.l.b16 %v36
  %v81 = vunpack.c.l.b16 %v37
  %v82 = vpack.c.b16 %v67, %v66
  %v83 = vpack.c.b16 %v69, %v68
  %v84 = vpack.c.b16 %v71, %v70
  %v85 = vpack.c.b16 %v73, %v72
  %v86 = vpack.c.b16 %v75, %v74
  %v87 = vpack.c.b16 %v77, %v76
  %v88 = vpack.c.b16 %v79, %v78
  %v89 = vpack.c.b16 %v81, %v80
  %98 = vmatprep.subr.bf16.mxu0 0
  %99 = vmatpush1.bf16.msra.mxu0 %v89
  %100 = vmatprep.subr.bf16.mxu0 0
  %101 = vmatpush1.bf16.msra.mxu0 %v88
  %102 = vmatprep.subr.bf16.mxu0 0
  %103 = vmatpush1.bf16.msra.mxu0 %v87
  %104 = vmatprep.subr.bf16.mxu0 0
  %105 = vmatpush1.bf16.msra.mxu0 %v86
  %106 = vmatprep.subr.bf16.mxu0 0
  %107 = vmatpush1.bf16.msra.mxu0 %v85
  %108 = vmatprep.subr.bf16.mxu0 0
  %109 = vmatpush1.bf16.msra.mxu0 %v84
  %110 = vmatprep.subr.bf16.mxu0 0
  %111 = vmatpush1.bf16.msra.mxu0 %v83
  %112 = vmatprep.subr.bf16.mxu0 0
  %113 = vmatpush1.bf16.msra.mxu0 %v82
  %114 = vmatprep.subr.bf16.mxu0 0
  %115 = vmatpush2.bf16.msra.mxu0 0
  %116 = vmatprep.subr.bf16.mxu0 0
  %117 = vmatpush2.bf16.msra.mxu0 0
  %118 = vmatprep.subr.bf16.mxu0 0
  %119 = vmatpush2.bf16.msra.mxu0 0
  %120 = vmatprep.subr.bf16.mxu0 0
  %121 = vmatpush2.bf16.msra.mxu0 0
  %122 = vmatprep.subr.bf16.mxu0 0
  %123 = vmatpush2.bf16.msra.mxu0 0
  %124 = vmatprep.subr.bf16.mxu0 0
  %125 = vmatpush2.bf16.msra.mxu0 0
  %126 = vmatprep.subr.bf16.mxu0 0
  %127 = vmatpush2.bf16.msra.mxu0 0
  %128 = vmatprep.subr.bf16.mxu0 0
  %129 = vmatpush2.bf16.msra.mxu0 0
  %130 = vmatprep.mubr.bf16.mxu0 0
  %131 = vmatmul.mubr.bf16.gmra.mxu0 %v46
  %v132 = vpop.f32.mrf.mxu0
  %v133 = vadd.f32 0.0, %v132
  %v134 = vpop.f32.mrf.mxu0
  %v135 = vpop.f32.mrf.mxu0
  %v136 = vadd.f32 0.0, %v135
  %v137 = vpop.f32.mrf.mxu0
  %138 = vmatprep.mubr.bf16.mxu0 0
  %139 = vmatmul.mubr.bf16.gmra.mxu0 %v47
  %v140 = vpop.f32.mrf.mxu0
  %v141 = vadd.f32 0.0, %v140
  %v142 = vpop.f32.mrf.mxu0
  %v143 = vpop.f32.mrf.mxu0
  %v144 = vadd.f32 0.0, %v143
  %v145 = vpop.f32.mrf.mxu0
  %146 = vdwg.mxu0
  %v147 = vmul.f32 %v133, %v133
  %v148 = vmul.f32 %v136, %v136
  %v149 = vmul.f32 %v141, %v141
  %v150 = vmul.f32 %v144, %v144
  %v151 = vpack.c.bf16 %v148, %v147
  %v152 = vpack.c.bf16 %v150, %v149
  %v153 = vld [vmem:[%s2] sm:$0xf]
  %v154 = vld [vmem:[%s2 + $0x4] sm:$0xf]
  %v155 = vld [vmem:[%s2 + $0x8] sm:$0xf]
  %v156 = vld [vmem:[%s2 + $0xc] sm:$0xf]
  %v157 = vld [vmem:[%s2 + $0x10] sm:$0xf]
  %v158 = vld [vmem:[%s2 + $0x14] sm:$0xf]
  %v159 = vld [vmem:[%s2 + $0x18] sm:$0xf]
  %v160 = vld [vmem:[%s2 + $0x1c] sm:$0xf]
  %v161 = vld [vmem:[%s2 + $0x20] sm:$0xf]
  %v162 = vld [vmem:[%s2 + $0x24] sm:$0xf]
  %v163 = vld [vmem:[%s2 + $0x28] sm:$0xf]
  %v164 = vld [vmem:[%s2 + $0x2c] sm:$0xf]
  %v165 = vld [vmem:[%s2 + $0x30] sm:$0xf]
  %v166 = vld [vmem:[%s2 + $0x34] sm:$0xf]
  %v167 = vld [vmem:[%s2 + $0x38] sm:$0xf]
  %v168 = vld [vmem:[%s2 + $0x3c] sm:$0xf]
  %v169 = vld [vmem:[%s3] sm:$0x1]
  %v171 = vlaneseq
  %v172 = vshrl.u32 %v171, 7
  %v173 = vsub.s32 0, %v172
  %v174 = vrot.slane %v169, %v173
  %v192 = vunpack.c.l.b16 %v153
  %v193 = vunpack.c.l.b16 %v154
  %v194 = vunpack.c.l.b16 %v155
  %v195 = vunpack.c.l.b16 %v156
  %v196 = vunpack.c.l.b16 %v157
  %v197 = vunpack.c.l.b16 %v158
  %v198 = vunpack.c.l.b16 %v159
  %v199 = vunpack.c.l.b16 %v160
  %v200 = vunpack.c.l.b16 %v161
  %v201 = vunpack.c.l.b16 %v162
  %v202 = vunpack.c.l.b16 %v163
  %v203 = vunpack.c.l.b16 %v164
  %v204 = vunpack.c.l.b16 %v165
  %v205 = vunpack.c.l.b16 %v166
  %v206 = vunpack.c.l.b16 %v167
  %v207 = vunpack.c.l.b16 %v168
  %v208 = vpack.c.b16 %v193, %v192
  %v209 = vpack.c.b16 %v195, %v194
  %v210 = vpack.c.b16 %v197, %v196
  %v211 = vpack.c.b16 %v199, %v198
  %v212 = vpack.c.b16 %v201, %v200
  %v213 = vpack.c.b16 %v203, %v202
  %v214 = vpack.c.b16 %v205, %v204
  %v215 = vpack.c.b16 %v207, %v206
  %224 = vmatprep.subr.bf16.mxu0 0
  %225 = vmatpush1.bf16.msra.mxu0 %v215
  %226 = vmatprep.subr.bf16.mxu0 0
  %227 = vmatpush1.bf16.msra.mxu0 %v214
  %228 = vmatprep.subr.bf16.mxu0 0
  %229 = vmatpush1.bf16.msra.mxu0 %v213
  %230 = vmatprep.subr.bf16.mxu0 0
  %231 = vmatpush1.bf16.msra.mxu0 %v212
  %232 = vmatprep.subr.bf16.mxu0 0
  %233 = vmatpush1.bf16.msra.mxu0 %v211
  %234 = vmatprep.subr.bf16.mxu0 0
  %235 = vmatpush1.bf16.msra.mxu0 %v210
  %236 = vmatprep.subr.bf16.mxu0 0
  %237 = vmatpush1.bf16.msra.mxu0 %v209
  %238 = vmatprep.subr.bf16.mxu0 0
  %239 = vmatpush1.bf16.msra.mxu0 %v208
  %240 = vmatprep.subr.bf16.mxu0 0
  %241 = vmatpush2.bf16.msra.mxu0 0
  %242 = vmatprep.subr.bf16.mxu0 0
  %243 = vmatpush2.bf16.msra.mxu0 0
  %244 = vmatprep.subr.bf16.mxu0 0
  %245 = vmatpush2.bf16.msra.mxu0 0
  %246 = vmatprep.subr.bf16.mxu0 0
  %247 = vmatpush2.bf16.msra.mxu0 0
  %248 = vmatprep.subr.bf16.mxu0 0
  %249 = vmatpush2.bf16.msra.mxu0 0
  %250 = vmatprep.subr.bf16.mxu0 0
  %251 = vmatpush2.bf16.msra.mxu0 0
  %252 = vmatprep.subr.bf16.mxu0 0
  %253 = vmatpush2.bf16.msra.mxu0 0
  %254 = vmatprep.subr.bf16.mxu0 0
  %255 = vmatpush2.bf16.msra.mxu0 0
  %256 = vmatprep.mubr.bf16.mxu0 0
  %257 = vmatmul.mubr.bf16.gmra.mxu0 %v151
  %v258 = vpop.f32.mrf.mxu0
  %v259 = vadd.f32 %v174, %v258
  %v260 = vpop.f32.mrf.mxu0
  %v261 = vpop.f32.mrf.mxu0
  %v262 = vadd.f32 %v174, %v261
  %v263 = vpop.f32.mrf.mxu0
  %264 = vmatprep.mubr.bf16.mxu0 0
  %265 = vmatmul.mubr.bf16.gmra.mxu0 %v152
  %v266 = vpop.f32.mrf.mxu0
  %v267 = vadd.f32 %v174, %v266
  %v268 = vpop.f32.mrf.mxu0
  %v269 = vpop.f32.mrf.mxu0
  %v270 = vadd.f32 %v174, %v269
  %v271 = vpop.f32.mrf.mxu0
  %272 = vdwg.mxu0
  %v273 = vmax.f32 %v259, 1e-06
  %v274 = vmax.f32 %v262, 1e-06
  %v275 = vmax.f32 %v267, 1e-06
  %v276 = vmax.f32 %v270, 1e-06
  %v277 = vrsqrt.pop %v273
  %v278 = vrsqrt.pop %v274
  %v279 = vrsqrt.pop %v275
  %v280 = vrsqrt.pop %v276
  %v281 = vmul.f32 %v133, %v277
  %v282 = vmul.f32 %v136, %v278
  %v283 = vmul.f32 %v141, %v279
  %v284 = vmul.f32 %v144, %v280
  %285 = vst [vmem:[%s4] sm:$0xff] %v281
  %286 = vst [vmem:[%s4 + $0x8] sm:$0xff] %v282
  %287 = vst [vmem:[%s4 + $0x10] sm:$0xff] %v283
  %288 = vst [vmem:[%s4 + $0x18] sm:$0xff] %v284
  // Predicated region
  $region18: #{_lambda_.5} parent=0 // pred_check
    _
  $region19: #{_lambda_.5} parent=0 // pred_check_branch
    %290 = sbr.rel (0) target = $region21
  $region20: #{_lambda_.5} parent=0 // pred_region
    _
  $region21: #{_lambda_.5} parent=0 // pred_fallthru
    _
  // Predicated region
  $region22: #{_lambda_.5} parent=0 // pred_check
    _
  $region23: #{_lambda_.5} parent=0 // pred_check_branch
    %292 = sbr.rel (0) target = $region25
  $region24: #{_lambda_.5} parent=0 // pred_region
    _
  $region25: #{_lambda_.5} parent=0 // pred_fallthru
    _

// kernel: _lambda_.4
$region0: #{_lambda_.4}
  #allocation0 [shape = 'u32[]', space=smem, size = 0x4, offset = 0x4, fixed_abs, tag = 'smem constant byte address 0x4 - core index']
  #allocation1 [shape = 'u32[144,128]{1,0:T(1,128)}', space=vmem, size = 0x12000, scoped, tag = 'internal scratch']
  %s0 = inlined_call_operand.vmem [shape: bf16[56,512], index: 0, kind: input, shape index: {}]
  %s1 = inlined_call_operand.vmem [shape: bf16[512,128], index: 1, kind: input, shape index: {}]
  %s2 = inlined_call_operand.vmem [shape: bf16[128,128], index: 2, kind: input, shape index: {}]
  %s3 = inlined_call_operand.vmem [shape: f32[1,128], index: 3, kind: input, shape index: {}]
  %s4 = inlined_call_operand.vmem [shape: f32[56,128], index: 4, kind: output, shape index: {}]
  %s5 = sld [smem:[#allocation0]]
  $region26: #{_lambda_.4} parent=0
    _
  %s7 = ssub.s32 1, %s5
  %s8 = scalar_select 0, %s7, %s5
  // Predicated region
  $region2: #{_lambda_.4} parent=0 // pred_check
    _
  $region3: #{_lambda_.4} parent=0 // pred_check_branch
    %10 = sbr.rel (0) target = $region5
  $region4: #{_lambda_.4} parent=0 // pred_region
    _
  $region5: #{_lambda_.4} parent=0 // pred_fallthru
    _
  // Predicated region
  $region6: #{_lambda_.4} parent=0 // pred_check
    _
  $region7: #{_lambda_.4} parent=0 // pred_check_branch
    %12 = sbr.rel (0) target = $region9
  $region8: #{_lambda_.4} parent=0 // pred_region
    _
  $region9: #{_lambda_.4} parent=0 // pred_fallthru
    _
  // Predicated region
  $region10: #{_lambda_.4} parent=0 // pred_check
    _
  $region11: #{_lambda_.4} parent=0 // pred_check_branch
    %14 = sbr.rel (0) target = $region13
  $region12: #{_lambda_.4} parent=0 // pred_region
    _
  $region13: #{_lambda_.4} parent=0 // pred_fallthru
    _
  // Predicated region
  $region14: #{_lambda_.4} parent=0 // pred_check
    _
  $region15: #{_lambda_.4} parent=0 // pred_check_branch
    %16 = sbr.rel (0) target = $region17
  $region16: #{_lambda_.4} parent=0 // pred_region
    _
  $region17: #{_lambda_.4} parent=0 // pred_fallthru
    _
  %v18 = vld [vmem:[%s0] sm:$0xff]
  %v19 = vld [vmem:[%s0 + $0x8] sm:$0xff]
  %v20 = vld [vmem:[%s0 + $0x10] sm:$0xff]
  %v21 = vld [vmem:[%s0 + $0x18] sm:$0xff]
  %v22 = vld [vmem:[%s0 + $0x20] sm:$0xff]
  %v23 = vld [vmem:[%s0 + $0x28] sm:$0xff]
  %v24 = vld [vmem:[%s0 + $0x30] sm:$0xff]
  %v25 = vld [vmem:[%s0 + $0x38] sm:$0xff]
  %v26 = vld [vmem:[%s0 + $0x40] sm:$0xff]
  %v27 = vld [vmem:[%s0 + $0x48] sm:$0xff]
  %v28 = vld [vmem:[%s0 + $0x50] sm:$0xff]
  %v29 = vld [vmem:[%s0 + $0x58] sm:$0xff]
  %v30 = vld [vmem:[%s0 + $0x60] sm:$0xff]
  %v31 = vld [vmem:[%s0 + $0x68] sm:$0xff]
  %v32 = vld [vmem:[%s1] sm:$0xf]
  %v33 = vld [vmem:[%s1 + $0x4] sm:$0xf]
  %v34 = vld [vmem:[%s1 + $0x8] sm:$0xf]
  %v35 = vld [vmem:[%s1 + $0xc] sm:$0xf]
  %v36 = vld [vmem:[%s1 + $0x10] sm:$0xf]
  %v37 = vld [vmem:[%s1 + $0x14] sm:$0xf]
  %v38 = vld [vmem:[%s1 + $0x18] sm:$0xf]
  %v39 = vld [vmem:[%s1 + $0x1c] sm:$0xf]
  %v40 = vld [vmem:[%s1 + $0x20] sm:$0xf]
  %v41 = vld [vmem:[%s1 + $0x24] sm:$0xf]
  %v42 = vld [vmem:[%s1 + $0x28] sm:$0xf]
  %v43 = vld [vmem:[%s1 + $0x2c] sm:$0xf]
  %v44 = vld [vmem:[%s1 + $0x30] sm:$0xf]
  %v45 = vld [vmem:[%s1 + $0x34] sm:$0xf]
  %v46 = vld [vmem:[%s1 + $0x38] sm:$0xf]
  %v47 = vld [vmem:[%s1 + $0x3c] sm:$0xf]
  %v48 = vld [vmem:[%s1 + $0x40] sm:$0xf]
  %v49 = vld [vmem:[%s1 + $0x44] sm:$0xf]
  %v50 = vld [vmem:[%s1 + $0x48] sm:$0xf]
  %v51 = vld [vmem:[%s1 + $0x4c] sm:$0xf]
  %v52 = vld [vmem:[%s1 + $0x50] sm:$0xf]
  %v53 = vld [vmem:[%s1 + $0x54] sm:$0xf]
  %v54 = vld [vmem:[%s1 + $0x58] sm:$0xf]
  %v55 = vld [vmem:[%s1 + $0x5c] sm:$0xf]
  %v56 = vld [vmem:[%s1 + $0x60] sm:$0xf]
  %v57 = vld [vmem:[%s1 + $0x64] sm:$0xf]
  %v58 = vld [vmem:[%s1 + $0x68] sm:$0xf]
  %v59 = vld [vmem:[%s1 + $0x6c] sm:$0xf]
  %v60 = vld [vmem:[%s1 + $0x70] sm:$0xf]
  %v61 = vld [vmem:[%s1 + $0x74] sm:$0xf]
  %v62 = vld [vmem:[%s1 + $0x78] sm:$0xf]
  %v63 = vld [vmem:[%s1 + $0x7c] sm:$0xf]
  %v64 = vld [vmem:[%s1 + $0x80] sm:$0xf]
  %v65 = vld [vmem:[%s1 + $0x84] sm:$0xf]
  %v66 = vld [vmem:[%s1 + $0x88] sm:$0xf]
  %v67 = vld [vmem:[%s1 + $0x8c] sm:$0xf]
  %v68 = vld [vmem:[%s1 + $0x90] sm:$0xf]
  %v69 = vld [vmem:[%s1 + $0x94] sm:$0xf]
  %v70 = vld [vmem:[%s1 + $0x98] sm:$0xf]
  %v71 = vld [vmem:[%s1 + $0x9c] sm:$0xf]
  %v72 = vld [vmem:[%s1 + $0xa0] sm:$0xf]
  %v73 = vld [vmem:[%s1 + $0xa4] sm:$0xf]
  %v74 = vld [vmem:[%s1 + $0xa8] sm:$0xf]
  %v75 = vld [vmem:[%s1 + $0xac] sm:$0xf]
  %v76 = vld [vmem:[%s1 + $0xb0] sm:$0xf]
  %v77 = vld [vmem:[%s1 + $0xb4] sm:$0xf]
  %v78 = vld [vmem:[%s1 + $0xb8] sm:$0xf]
  %v79 = vld [vmem:[%s1 + $0xbc] sm:$0xf]
  %v80 = vld [vmem:[%s1 + $0xc0] sm:$0xf]
  %v81 = vld [vmem:[%s1 + $0xc4] sm:$0xf]
  %v82 = vld [vmem:[%s1 + $0xc8] sm:$0xf]
  %v83 = vld [vmem:[%s1 + $0xcc] sm:$0xf]
  %v84 = vld [vmem:[%s1 + $0xd0] sm:$0xf]
  %v85 = vld [vmem:[%s1 + $0xd4] sm:$0xf]
  %v86 = vld [vmem:[%s1 + $0xd8] sm:$0xf]
  %v87 = vld [vmem:[%s1 + $0xdc] sm:$0xf]
  %v88 = vld [vmem:[%s1 + $0xe0] sm:$0xf]
  %v89 = vld [vmem:[%s1 + $0xe4] sm:$0xf]
  %v90 = vld [vmem:[%s1 + $0xe8] sm:$0xf]
  %v91 = vld [vmem:[%s1 + $0xec] sm:$0xf]
  %v92 = vld [vmem:[%s1 + $0xf0] sm:$0xf]
  %v93 = vld [vmem:[%s1 + $0xf4] sm:$0xf]
  %v94 = vld [vmem:[%s1 + $0xf8] sm:$0xf]
  %v95 = vld [vmem:[%s1 + $0xfc] sm:$0xf]
  %v110 = vunpack.c.l.b16 %v18
  %v111 = vunpack.c.h.b16 %v18
  %v112 = vunpack.c.l.b16 %v19
  %v113 = vunpack.c.h.b16 %v19
  %v114 = vunpack.c.l.b16 %v20
  %v115 = vunpack.c.h.b16 %v20
  %v116 = vunpack.c.l.b16 %v21
  %v117 = vunpack.c.h.b16 %v21
  %v118 = vunpack.c.l.b16 %v22
  %v119 = vunpack.c.h.b16 %v22
  %v120 = vunpack.c.l.b16 %v23
  %v121 = vunpack.c.h.b16 %v23
  %v122 = vunpack.c.l.b16 %v24
  %v123 = vunpack.c.h.b16 %v24
  %v124 = vunpack.c.l.b16 %v25
  %v125 = vunpack.c.h.b16 %v25
  %v126 = vunpack.c.l.b16 %v26
  %v127 = vunpack.c.h.b16 %v26
  %v128 = vunpack.c.l.b16 %v27
  %v129 = vunpack.c.h.b16 %v27
  %v130 = vunpack.c.l.b16 %v28
  %v131 = vunpack.c.h.b16 %v28
  %v132 = vunpack.c.l.b16 %v29
  %v133 = vunpack.c.h.b16 %v29
  %v134 = vunpack.c.l.b16 %v30
  %v135 = vunpack.c.h.b16 %v30
  %v136 = vunpack.c.l.b16 %v31
  %v137 = vunpack.c.h.b16 %v31
  %v138 = vpack.c.b16 %v114, %v110
  %v139 = vpack.c.b16 %v115, %v111
  %v140 = vpack.c.b16 %v116, %v112
  %v141 = vpack.c.b16 %v117, %v113
  %v142 = vpack.c.b16 %v122, %v118
  %v143 = vpack.c.b16 %v123, %v119
  %v144 = vpack.c.b16 %v124, %v120
  %v145 = vpack.c.b16 %v125, %v121
  %v146 = vpack.c.b16 %v130, %v126
  %v147 = vpack.c.b16 %v131, %v127
  %v148 = vpack.c.b16 %v132, %v128
  %v149 = vpack.c.b16 %v133, %v129
  %v150 = vpack.c.b16 %v134, %v134
  %v151 = vpack.c.b16 %v135, %v135
  %v152 = vpack.c.b16 %v136, %v136
  %v153 = vpack.c.b16 %v137, %v137
  %v234 = vunpack.c.l.b16 %v32
  %v235 = vunpack.c.l.b16 %v33
  %v236 = vunpack.c.l.b16 %v34
  %v237 = vunpack.c.l.b16 %v35
  %v238 = vunpack.c.l.b16 %v36
  %v239 = vunpack.c.l.b16 %v37
  %v240 = vunpack.c.l.b16 %v38
  %v241 = vunpack.c.l.b16 %v39
  %v242 = vunpack.c.l.b16 %v40
  %v243 = vunpack.c.l.b16 %v41
  %v244 = vunpack.c.l.b16 %v42
  %v245 = vunpack.c.l.b16 %v43
  %v246 = vunpack.c.l.b16 %v44
  %v247 = vunpack.c.l.b16 %v45
  %v248 = vunpack.c.l.b16 %v46
  %v249 = vunpack.c.l.b16 %v47
  %v250 = vunpack.c.l.b16 %v48
  %v251 = vunpack.c.l.b16 %v49
  %v252 = vunpack.c.l.b16 %v50
  %v253 = vunpack.c.l.b16 %v51
  %v254 = vunpack.c.l.b16 %v52
  %v255 = vunpack.c.l.b16 %v53
  %v256 = vunpack.c.l.b16 %v54
  %v257 = vunpack.c.l.b16 %v55
  %v258 = vunpack.c.l.b16 %v56
  %v259 = vunpack.c.l.b16 %v57
  %v260 = vunpack.c.l.b16 %v58
  %v261 = vunpack.c.l.b16 %v59
  %v262 = vunpack.c.l.b16 %v60
  %v263 = vunpack.c.l.b16 %v61
  %v264 = vunpack.c.l.b16 %v62
  %v265 = vunpack.c.l.b16 %v63
  %v266 = vunpack.c.l.b16 %v64
  %v267 = vunpack.c.l.b16 %v65
  %v268 = vunpack.c.l.b16 %v66
  %v269 = vunpack.c.l.b16 %v67
  %v270 = vunpack.c.l.b16 %v68
  %v271 = vunpack.c.l.b16 %v69
  %v272 = vunpack.c.l.b16 %v70
  %v273 = vunpack.c.l.b16 %v71
  %v274 = vunpack.c.l.b16 %v72
  %v275 = vunpack.c.l.b16 %v73
  %v276 = vunpack.c.l.b16 %v74
  %v277 = vunpack.c.l.b16 %v75
  %v278 = vunpack.c.l.b16 %v76
  %v279 = vunpack.c.l.b16 %v77
  %v280 = vunpack.c.l.b16 %v78
  %v281 = vunpack.c.l.b16 %v79
  %v282 = vunpack.c.l.b16 %v80
  %v283 = vunpack.c.l.b16 %v81
  %v284 = vunpack.c.l.b16 %v82
  %v285 = vunpack.c.l.b16 %v83
  %v286 = vunpack.c.l.b16 %v84
  %v287 = vunpack.c.l.b16 %v85
  %v288 = vunpack.c.l.b16 %v86
  %v289 = vunpack.c.l.b16 %v87
  %v290 = vunpack.c.l.b16 %v88
  %v291 = vunpack.c.l.b16 %v89
  %v292 = vunpack.c.l.b16 %v90
  %v293 = vunpack.c.l.b16 %v91
  %v294 = vunpack.c.l.b16 %v92
  %v295 = vunpack.c.l.b16 %v93
  %v296 = vunpack.c.l.b16 %v94
  %v297 = vunpack.c.l.b16 %v95
  %v298 = vpack.c.b16 %v235, %v234
  %v299 = vpack.c.b16 %v237, %v236
  %v300 = vpack.c.b16 %v239, %v238
  %v301 = vpack.c.b16 %v241, %v240
  %v302 = vpack.c.b16 %v243, %v242
  %v303 = vpack.c.b16 %v245, %v244
  %v304 = vpack.c.b16 %v247, %v246
  %v305 = vpack.c.b16 %v249, %v248
  %v306 = vpack.c.b16 %v251, %v250
  %v307 = vpack.c.b16 %v253, %v252
  %v308 = vpack.c.b16 %v255, %v254
  %v309 = vpack.c.b16 %v257, %v256
  %v310 = vpack.c.b16 %v259, %v258
  %v311 = vpack.c.b16 %v261, %v260
  %v312 = vpack.c.b16 %v263, %v262
  %v313 = vpack.c.b16 %v265, %v264
  %v314 = vpack.c.b16 %v267, %v266
  %v315 = vpack.c.b16 %v269, %v268
  %v316 = vpack.c.b16 %v271, %v270
  %v317 = vpack.c.b16 %v273, %v272
  %v318 = vpack.c.b16 %v275, %v274
  %v319 = vpack.c.b16 %v277, %v276
  %v320 = vpack.c.b16 %v279, %v278
  %v321 = vpack.c.b16 %v281, %v280
  %v322 = vpack.c.b16 %v283, %v282
  %v323 = vpack.c.b16 %v285, %v284
  %v324 = vpack.c.b16 %v287, %v286
  %v325 = vpack.c.b16 %v289, %v288
  %v326 = vpack.c.b16 %v291, %v290
  %v327 = vpack.c.b16 %v293, %v292
  %v328 = vpack.c.b16 %v295, %v294
  %v329 = vpack.c.b16 %v297, %v296
  %362 = vmatprep.subr.bf16.mxu0 0
  %363 = vmatpush1.bf16.msra.mxu0 %v305
  %364 = vmatprep.subr.bf16.mxu0 0
  %365 = vmatpush1.bf16.msra.mxu0 %v304
  %366 = vmatprep.subr.bf16.mxu0 0
  %367 = vmatpush1.bf16.msra.mxu0 %v303
  %368 = vmatprep.subr.bf16.mxu0 0
  %369 = vmatpush1.bf16.msra.mxu0 %v302
  %370 = vmatprep.subr.bf16.mxu0 0
  %371 = vmatpush1.bf16.msra.mxu0 %v301
  %372 = vmatprep.subr.bf16.mxu0 0
  %373 = vmatpush1.bf16.msra.mxu0 %v300
  %374 = vmatprep.subr.bf16.mxu0 0
  %375 = vmatpush1.bf16.msra.mxu0 %v299
  %376 = vmatprep.subr.bf16.mxu0 0
  %377 = vmatpush1.bf16.msra.mxu0 %v298
  %378 = vmatprep.subr.bf16.mxu0 0
  %379 = vmatpush2.bf16.msra.mxu0 %v313
  %380 = vmatprep.subr.bf16.mxu0 0
  %381 = vmatpush2.bf16.msra.mxu0 %v312
  %382 = vmatprep.subr.bf16.mxu0 0
  %383 = vmatpush2.bf16.msra.mxu0 %v311
  %384 = vmatprep.subr.bf16.mxu0 0
  %385 = vmatpush2.bf16.msra.mxu0 %v310
  %386 = vmatprep.subr.bf16.mxu0 0
  %387 = vmatpush2.bf16.msra.mxu0 %v309
  %388 = vmatprep.subr.bf16.mxu0 0
  %389 = vmatpush2.bf16.msra.mxu0 %v308
  %390 = vmatprep.subr.bf16.mxu0 0
  %391 = vmatpush2.bf16.msra.mxu0 %v307
  %392 = vmatprep.subr.bf16.mxu0 0
  %393 = vmatpush2.bf16.msra.mxu0 %v306
  %394 = vmatprep.mubr.bf16.mxu0 %v139
  %395 = vmatmul.mubr.bf16.gmra.mxu0 %v138
  %v396 = vpop.f32.mrf.mxu0
  %v397 = vadd.f32 0.0, %v396
  %v398 = vpop.f32.mrf.mxu0
  %v399 = vpop.f32.mrf.mxu0
  %v400 = vadd.f32 0.0, %v399
  %v401 = vpop.f32.mrf.mxu0
  %402 = vmatprep.mubr.bf16.mxu0 %v143
  %403 = vmatmul.mubr.bf16.gmra.mxu0 %v142
  %v404 = vpop.f32.mrf.mxu0
  %v405 = vadd.f32 0.0, %v404
  %v406 = vpop.f32.mrf.mxu0
  %v407 = vpop.f32.mrf.mxu0
  %v408 = vadd.f32 0.0, %v407
  %v409 = vpop.f32.mrf.mxu0
  %410 = vmatprep.mubr.bf16.mxu0 %v147
  %411 = vmatmul.mubr.bf16.gmra.mxu0 %v146
  %v412 = vpop.f32.mrf.mxu0
  %v413 = vadd.f32 0.0, %v412
  %v414 = vpop.f32.mrf.mxu0
  %v415 = vpop.f32.mrf.mxu0
  %v416 = vadd.f32 0.0, %v415
  %v417 = vpop.f32.mrf.mxu0
  %418 = vmatprep.mubr.bf16.mxu0 %v151
  %419 = vmatmul.mubr.bf16.gmra.mxu0 %v150
  %v420 = vpop.f32.mrf.mxu0
  %v421 = vadd.f32 0.0, %v420
  %v422 = vpop.f32.mrf.mxu0
  %v423 = vpop.f32.mrf.mxu0
  %v424 = vpop.f32.mrf.mxu0
  %425 = vdwg.mxu0
  %426 = vmatprep.subr.bf16.mxu0 0
  %427 = vmatpush1.bf16.msra.mxu0 %v321
  %428 = vmatprep.subr.bf16.mxu0 0
  %429 = vmatpush1.bf16.msra.mxu0 %v320
  %430 = vmatprep.subr.bf16.mxu0 0
  %431 = vmatpush1.bf16.msra.mxu0 %v319
  %432 = vmatprep.subr.bf16.mxu0 0
  %433 = vmatpush1.bf16.msra.mxu0 %v318
  %434 = vmatprep.subr.bf16.mxu0 0
  %435 = vmatpush1.bf16.msra.mxu0 %v317
  %436 = vmatprep.subr.bf16.mxu0 0
  %437 = vmatpush1.bf16.msra.mxu0 %v316
  %438 = vmatprep.subr.bf16.mxu0 0
  %439 = vmatpush1.bf16.msra.mxu0 %v315
  %440 = vmatprep.subr.bf16.mxu0 0
  %441 = vmatpush1.bf16.msra.mxu0 %v314
  %442 = vmatprep.subr.bf16.mxu0 0
  %443 = vmatpush2.bf16.msra.mxu0 %v329
  %444 = vmatprep.subr.bf16.mxu0 0
  %445 = vmatpush2.bf16.msra.mxu0 %v328
  %446 = vmatprep.subr.bf16.mxu0 0
  %447 = vmatpush2.bf16.msra.mxu0 %v327
  %448 = vmatprep.subr.bf16.mxu0 0
  %449 = vmatpush2.bf16.msra.mxu0 %v326
  %450 = vmatprep.subr.bf16.mxu0 0
  %451 = vmatpush2.bf16.msra.mxu0 %v325
  %452 = vmatprep.subr.bf16.mxu0 0
  %453 = vmatpush2.bf16.msra.mxu0 %v324
  %454 = vmatprep.subr.bf16.mxu0 0
  %455 = vmatpush2.bf16.msra.mxu0 %v323
  %456 = vmatprep.subr.bf16.mxu0 0
  %457 = vmatpush2.bf16.msra.mxu0 %v322
  %458 = vmatprep.mubr.bf16.mxu0 %v141
  %459 = vmatmul.mubr.bf16.gmra.mxu0 %v140
  %v460 = vpop.f32.mrf.mxu0
  %v461 = vadd.f32 %v397, %v460
  %v462 = vpop.f32.mrf.mxu0
  %v463 = vpop.f32.mrf.mxu0
  %v464 = vadd.f32 %v400, %v463
  %v465 = vpop.f32.mrf.mxu0
  %466 = vmatprep.mubr.bf16.mxu0 %v145
  %467 = vmatmul.mubr.bf16.gmra.mxu0 %v144
  %v468 = vpop.f32.mrf.mxu0
  %v469 = vadd.f32 %v405, %v468
  %v470 = vpop.f32.mrf.mxu0
  %v471 = vpop.f32.mrf.mxu0
  %v472 = vadd.f32 %v408, %v471
  %v473 = vpop.f32.mrf.mxu0
  %474 = vmatprep.mubr.bf16.mxu0 %v149
  %475 = vmatmul.mubr.bf16.gmra.mxu0 %v148
  %v476 = vpop.f32.mrf.mxu0
  %v477 = vadd.f32 %v413, %v476
  %v478 = vpop.f32.mrf.mxu0
  %v479 = vpop.f32.mrf.mxu0
  %v480 = vadd.f32 %v416, %v479
  %v481 = vpop.f32.mrf.mxu0
  %482 = vmatprep.mubr.bf16.mxu0 %v153
  %483 = vmatmul.mubr.bf16.gmra.mxu0 %v152
  %v484 = vpop.f32.mrf.mxu0
  %v485 = vadd.f32 %v421, %v484
  %v486 = vpop.f32.mrf.mxu0
  %v487 = vpop.f32.mrf.mxu0
  %v488 = vpop.f32.mrf.mxu0
  %489 = vdwg.mxu0
  %v490 = vmul.f32 %v461, %v461
  %v491 = vmul.f32 %v464, %v464
  %v492 = vmul.f32 %v469, %v469
  %v493 = vmul.f32 %v472, %v472
  %v494 = vmul.f32 %v477, %v477
  %v495 = vmul.f32 %v480, %v480
  %v496 = vmul.f32 %v485, %v485
  %v497 = vpack.c.bf16 %v491, %v490
  %v498 = vpack.c.bf16 %v493, %v492
  %v499 = vpack.c.bf16 %v495, %v494
  %v500 = vpack.c.bf16 %v496, %v496
  %v501 = vld [vmem:[%s2] sm:$0xf]
  %v502 = vld [vmem:[%s2 + $0x4] sm:$0xf]
  %v503 = vld [vmem:[%s2 + $0x8] sm:$0xf]
  %v504 = vld [vmem:[%s2 + $0xc] sm:$0xf]
  %v505 = vld [vmem:[%s2 + $0x10] sm:$0xf]
  %v506 = vld [vmem:[%s2 + $0x14] sm:$0xf]
  %v507 = vld [vmem:[%s2 + $0x18] sm:$0xf]
  %v508 = vld [vmem:[%s2 + $0x1c] sm:$0xf]
  %v509 = vld [vmem:[%s2 + $0x20] sm:$0xf]
  %v510 = vld [vmem:[%s2 + $0x24] sm:$0xf]
  %v511 = vld [vmem:[%s2 + $0x28] sm:$0xf]
  %v512 = vld [vmem:[%s2 + $0x2c] sm:$0xf]
  %v513 = vld [vmem:[%s2 + $0x30] sm:$0xf]
  %v514 = vld [vmem:[%s2 + $0x34] sm:$0xf]
  %v515 = vld [vmem:[%s2 + $0x38] sm:$0xf]
  %v516 = vld [vmem:[%s2 + $0x3c] sm:$0xf]
  %v517 = vld [vmem:[%s3] sm:$0x1]
  %v519 = vlaneseq
  %v520 = vshrl.u32 %v519, 7
  %v521 = vsub.s32 0, %v520
  %v522 = vrot.slane %v517, %v521
  %v540 = vunpack.c.l.b16 %v501
  %v541 = vunpack.c.l.b16 %v502
  %v542 = vunpack.c.l.b16 %v503
  %v543 = vunpack.c.l.b16 %v504
  %v544 = vunpack.c.l.b16 %v505
  %v545 = vunpack.c.l.b16 %v506
  %v546 = vunpack.c.l.b16 %v507
  %v547 = vunpack.c.l.b16 %v508
  %v548 = vunpack.c.l.b16 %v509
  %v549 = vunpack.c.l.b16 %v510
  %v550 = vunpack.c.l.b16 %v511
  %v551 = vunpack.c.l.b16 %v512
  %v552 = vunpack.c.l.b16 %v513
  %v553 = vunpack.c.l.b16 %v514
  %v554 = vunpack.c.l.b16 %v515
  %v555 = vunpack.c.l.b16 %v516
  %v556 = vpack.c.b16 %v541, %v540
  %v557 = vpack.c.b16 %v543, %v542
  %v558 = vpack.c.b16 %v545, %v544
  %v559 = vpack.c.b16 %v547, %v546
  %v560 = vpack.c.b16 %v549, %v548
  %v561 = vpack.c.b16 %v551, %v550
  %v562 = vpack.c.b16 %v553, %v552
  %v563 = vpack.c.b16 %v555, %v554
  %572 = vmatprep.subr.bf16.mxu0 0
  %573 = vmatpush1.bf16.msra.mxu0 %v563
  %574 = vmatprep.subr.bf16.mxu0 0
  %575 = vmatpush1.bf16.msra.mxu0 %v562
  %576 = vmatprep.subr.bf16.mxu0 0
  %577 = vmatpush1.bf16.msra.mxu0 %v561
  %578 = vmatprep.subr.bf16.mxu0 0
  %579 = vmatpush1.bf16.msra.mxu0 %v560
  %580 = vmatprep.subr.bf16.mxu0 0
  %581 = vmatpush1.bf16.msra.mxu0 %v559
  %582 = vmatprep.subr.bf16.mxu0 0
  %583 = vmatpush1.bf16.msra.mxu0 %v558
  %584 = vmatprep.subr.bf16.mxu0 0
  %585 = vmatpush1.bf16.msra.mxu0 %v557
  %586 = vmatprep.subr.bf16.mxu0 0
  %587 = vmatpush1.bf16.msra.mxu0 %v556
  %588 = vmatprep.subr.bf16.mxu0 0
  %589 = vmatpush2.bf16.msra.mxu0 0
  %590 = vmatprep.subr.bf16.mxu0 0
  %591 = vmatpush2.bf16.msra.mxu0 0
  %592 = vmatprep.subr.bf16.mxu0 0
  %593 = vmatpush2.bf16.msra.mxu0 0
  %594 = vmatprep.subr.bf16.mxu0 0
  %595 = vmatpush2.bf16.msra.mxu0 0
  %596 = vmatprep.subr.bf16.mxu0 0
  %597 = vmatpush2.bf16.msra.mxu0 0
  %598 = vmatprep.subr.bf16.mxu0 0
  %599 = vmatpush2.bf16.msra.mxu0 0
  %600 = vmatprep.subr.bf16.mxu0 0
  %601 = vmatpush2.bf16.msra.mxu0 0
  %602 = vmatprep.subr.bf16.mxu0 0
  %603 = vmatpush2.bf16.msra.mxu0 0
  %604 = vmatprep.mubr.bf16.mxu0 0
  %605 = vmatmul.mubr.bf16.gmra.mxu0 %v497
  %v606 = vpop.f32.mrf.mxu0
  %v607 = vadd.f32 %v522, %v606
  %v608 = vpop.f32.mrf.mxu0
  %v609 = vpop.f32.mrf.mxu0
  %v610 = vadd.f32 %v522, %v609
  %v611 = vpop.f32.mrf.mxu0
  %612 = vmatprep.mubr.bf16.mxu0 0
  %613 = vmatmul.mubr.bf16.gmra.mxu0 %v498
  %v614 = vpop.f32.mrf.mxu0
  %v615 = vadd.f32 %v522, %v614
  %v616 = vpop.f32.mrf.mxu0
  %v617 = vpop.f32.mrf.mxu0
  %v618 = vadd.f32 %v522, %v617
  %v619 = vpop.f32.mrf.mxu0
  %620 = vmatprep.mubr.bf16.mxu0 0
  %621 = vmatmul.mubr.bf16.gmra.mxu0 %v499
  %v622 = vpop.f32.mrf.mxu0
  %v623 = vadd.f32 %v522, %v622
  %v624 = vpop.f32.mrf.mxu0
  %v625 = vpop.f32.mrf.mxu0
  %v626 = vadd.f32 %v522, %v625
  %v627 = vpop.f32.mrf.mxu0
  %628 = vmatprep.mubr.bf16.mxu0 0
  %629 = vmatmul.mubr.bf16.gmra.mxu0 %v500
  %v630 = vpop.f32.mrf.mxu0
  %v631 = vadd.f32 %v522, %v630
  %v632 = vpop.f32.mrf.mxu0
  %v633 = vpop.f32.mrf.mxu0
  %v634 = vpop.f32.mrf.mxu0
  %635 = vdwg.mxu0
  %v636 = vmax.f32 %v607, 1e-06
  %v637 = vmax.f32 %v610, 1e-06
  %v638 = vmax.f32 %v615, 1e-06
  %v639 = vmax.f32 %v618, 1e-06
  %v640 = vmax.f32 %v623, 1e-06
  %v641 = vmax.f32 %v626, 1e-06
  %v642 = vmax.f32 %v631, 1e-06
  %v643 = vrsqrt.pop %v636
  %v644 = vrsqrt.pop %v637
  %v645 = vrsqrt.pop %v638
  %v646 = vrsqrt.pop %v639
  %v647 = vrsqrt.pop %v640
  %v648 = vrsqrt.pop %v641
  %v649 = vrsqrt.pop %v642
  %v650 = vmul.f32 %v461, %v643
  %v651 = vmul.f32 %v464, %v644
  %v652 = vmul.f32 %v469, %v645
  %v653 = vmul.f32 %v472, %v646
  %v654 = vmul.f32 %v477, %v647
  %v655 = vmul.f32 %v480, %v648
  %v656 = vmul.f32 %v485, %v649
  %657 = vst [vmem:[%s4] sm:$0xff] %v650
  %658 = vst [vmem:[%s4 + $0x8] sm:$0xff] %v651
  %659 = vst [vmem:[%s4 + $0x10] sm:$0xff] %v652
  %660 = vst [vmem:[%s4 + $0x18] sm:$0xff] %v653
  %661 = vst [vmem:[%s4 + $0x20] sm:$0xff] %v654
  %662 = vst [vmem:[%s4 + $0x28] sm:$0xff] %v655
  %663 = vst [vmem:[%s4 + $0x30] sm:$0xff] %v656
  // Predicated region
  $region18: #{_lambda_.4} parent=0 // pred_check
    _
  $region19: #{_lambda_.4} parent=0 // pred_check_branch
    %665 = sbr.rel (0) target = $region21
  $region20: #{_lambda_.4} parent=0 // pred_region
    _
  $region21: #{_lambda_.4} parent=0 // pred_fallthru
    _
  // Predicated region
  $region22: #{_lambda_.4} parent=0 // pred_check
    _
  $region23: #{_lambda_.4} parent=0 // pred_check_branch
    %667 = sbr.rel (0) target = $region25
  $region24: #{_lambda_.4} parent=0 // pred_region
    _
  $region25: #{_lambda_.4} parent=0 // pred_fallthru
    _

</llo_original>
